<compile_context>
chip_gen: v6e
topology: v6e:2x2x1
jax: 0.10.0
libtpu: 0.0.40
codegen_flags: <defaults>
</compile_context>

<pallas_src>
import functools
import math

import jax
import jax.numpy as jnp
from jax.experimental import pallas as pl
from jax.experimental.pallas import tpu as pltpu


def make_freq_bands(freq_num: int, freq_type: str):
    """Static python-float frequency bands (kernel unrolls over them)."""
    if freq_type == "log":
        return tuple(2.0 ** i for i in range(freq_num))
    elif freq_type == "linear":
        if freq_num == 1:
            return (1.0,)
        hi = 2.0 ** (freq_num - 1)
        step = (hi - 1.0) / (freq_num - 1)
        return tuple(1.0 + i * step for i in range(freq_num))
    else:
        raise NotImplementedError(freq_type)


def _fourier_kernel(x_ref, o_ref, *, freq_bands):
    """Build the whole output tile in vregs; one full-tile store."""
    x = x_ref[...]
    x_f32 = x.astype(jnp.float32)           # f32 math even for bf16 I/O
    pieces = [x.astype(o_ref.dtype)]         # identity part, exact passthrough
    for f in freq_bands:                     # static tuple -> unrolled
        xf = f * x_f32
        pieces.append(jnp.sin(xf).astype(o_ref.dtype))
        pieces.append(jnp.cos(xf).astype(o_ref.dtype))
    o_ref[...] = jnp.concatenate(pieces, axis=-1)


def _round_up(x: int, m: int) -> int:
    return ((x + m - 1) // m) * m


def _choose_tile_rows(n_rows: int, input_size: int, out_size: int,
                      itemsize: int) -> int:
    """Row tile: 16-aligned, sized so 2x(in+out) VMEM blocks stay ~12 MiB."""
    row_align = 16  # covers f32 (8-sublane) and bf16 (16-sublane) tiling
    in_lanes = _round_up(input_size, 128)    # VMEM lane padding
    out_lanes = _round_up(out_size, 128)
    per_row = (in_lanes + out_lanes) * itemsize
    budget = 6 * 1024 * 1024                 # x2 (double buffering) ~= 12 MiB
    tile = budget // per_row
    tile = max(row_align, min(4096, tile))
    tile = (tile // row_align) * row_align
    tile = min(tile, _round_up(n_rows, row_align))
    return max(tile, row_align)


def fourier_feature_mapping(x, freq_num: int, freq_type: str = "log"):
    """x: (..., input_size) -> (..., input_size * (1 + 2*freq_num))."""
    input_size = x.shape[-1]
    out_size = input_size * (1 + 2 * freq_num)
    lead_shape = x.shape[:-1]
    n_rows = math.prod(lead_shape) if lead_shape else 1
    x2d = x.reshape(n_rows, input_size)

    freq_bands = make_freq_bands(freq_num, freq_type)
    itemsize = jnp.dtype(x.dtype).itemsize
    tile_rows = _choose_tile_rows(n_rows, input_size, out_size, itemsize)
    grid = (pl.cdiv(n_rows, tile_rows),)

    kernel = functools.partial(_fourier_kernel, freq_bands=freq_bands)

    out2d = pl.pallas_call(
        kernel,
        out_shape=jax.ShapeDtypeStruct((n_rows, out_size), x.dtype),
        grid_spec=pltpu.PrefetchScalarGridSpec(
            num_scalar_prefetch=0,
            grid=grid,
            # last dims equal the full array extent, so the (8,128) rule is
            # satisfied even when input_size/out_size are not 128-multiples.
            in_specs=[pl.BlockSpec((tile_rows, input_size), lambda i: (i, 0))],
            out_specs=pl.BlockSpec((tile_rows, out_size), lambda i: (i, 0)),
        ),
        compiler_params=pltpu.CompilerParams(
            dimension_semantics=("parallel",),
            vmem_limit_bytes=32 * 1024 * 1024,
        ),
    )(x2d)

    return out2d.reshape(*lead_shape, out_size)


if __name__ == "__main__":
    key = jax.random.PRNGKey(0)
    batch, seq, input_size, freq_num = 2, 8, 16, 4
    x = jax.random.normal(key, (batch, seq, input_size), dtype=jnp.float32)

    out = fourier_feature_mapping(x, freq_num=freq_num, freq_type="log")
    out = jax.block_until_ready(out)

    bands = make_freq_bands(freq_num, "log")
    ref = jnp.concatenate(
        [x] + [t for f in bands for t in (jnp.sin(f * x), jnp.cos(f * x))],
        axis=-1,
    )
    assert out.shape == (batch, seq, input_size * (1 + 2 * freq_num)), out.shape
    assert jnp.allclose(out, ref, atol=1e-5), "mismatch vs reference (log)"

    # Odd row count (N % 8 != 0) exercises the partial-last-block path that the
    # old heuristic special-cased away.
    x2 = jax.random.normal(jax.random.PRNGKey(0), (3, 5, input_size),
                           dtype=jnp.float32)
    out2 = jax.block_until_ready(
        fourier_feature_mapping(x2, freq_num=freq_num, freq_type="linear"))
    bands2 = make_freq_bands(freq_num, "linear")
    ref2 = jnp.concatenate(
        [x2] + [t for f in bands2 for t in (jnp.sin(f * x2), jnp.cos(f * x2))],
        axis=-1,
    )
    assert out2.shape == (3, 5, input_size * (1 + 2 * freq_num)), out2.shape
    assert jnp.allclose(out2, ref2, atol=1e-5), "mismatch vs reference (linear)"

    print("KERNEL_OK")
</pallas_src>

<mosaic_0001>
module attributes {stable_mosaic.version = 11 : i64} {
  func.func @_fourier_kernel(%arg0: i32, %arg1: memref<16x16xf32, #tpu.memory_space<vmem>>, %arg2: memref<16x144xf32, #tpu.memory_space<vmem>>) attributes {dimension_semantics = [#tpu.dimension_semantics<parallel>], iteration_bounds = array<i64: 1>, scalar_prefetch = 0 : i64, scratch_operands = 0 : i64, tpu.core_type = #tpu.core_type<tc>, window_params = [{transform_indices = @transform_0, window_bounds = array<i64: 16, 16>}, {transform_indices = @transform_1, window_bounds = array<i64: 16, 144>}]} {
    %c0 = arith.constant 0 : index
    %c0_0 = arith.constant 0 : index
    %0 = vector.load %arg1[%c0, %c0_0] : memref<16x16xf32, #tpu.memory_space<vmem>>, vector<16x16xf32>
    %cst = arith.constant 1.000000e+00 : f32
    %1 = vector.broadcast %cst : f32 to vector<16x16xf32>
    %2 = arith.mulf %1, %0 : vector<16x16xf32>
    %3 = math.sin %2 : vector<16x16xf32>
    %4 = math.cos %2 : vector<16x16xf32>
    %cst_1 = arith.constant 2.000000e+00 : f32
    %5 = vector.broadcast %cst_1 : f32 to vector<16x16xf32>
    %6 = arith.mulf %5, %0 : vector<16x16xf32>
    %7 = math.sin %6 : vector<16x16xf32>
    %8 = math.cos %6 : vector<16x16xf32>
    %cst_2 = arith.constant 4.000000e+00 : f32
    %9 = vector.broadcast %cst_2 : f32 to vector<16x16xf32>
    %10 = arith.mulf %9, %0 : vector<16x16xf32>
    %11 = math.sin %10 : vector<16x16xf32>
    %12 = math.cos %10 : vector<16x16xf32>
    %cst_3 = arith.constant 8.000000e+00 : f32
    %13 = vector.broadcast %cst_3 : f32 to vector<16x16xf32>
    %14 = arith.mulf %13, %0 : vector<16x16xf32>
    %15 = math.sin %14 : vector<16x16xf32>
    %16 = math.cos %14 : vector<16x16xf32>
    %17 = tpu.concatenate %0, %3, %4, %7, %8, %11, %12, %15, %16 in 1 : vector<16x16xf32>, vector<16x16xf32>, vector<16x16xf32>, vector<16x16xf32>, vector<16x16xf32>, vector<16x16xf32>, vector<16x16xf32>, vector<16x16xf32>, vector<16x16xf32> -> vector<16x144xf32>
    %c0_4 = arith.constant 0 : index
    %c0_5 = arith.constant 0 : index
    %18 = vector.load %arg2[%c0_4, %c0_5] : memref<16x144xf32, #tpu.memory_space<vmem>>, vector<16x144xf32>
    tpu.vector_store %arg2[%c0_4, %c0_5], %17 {strides = array<i32>} : memref<16x144xf32, #tpu.memory_space<vmem>>, vector<16x144xf32>,
    return
  }
  func.func @transform_0(%arg0: i32) -> (i32, i32) {
    %c0_i32 = arith.constant 0 : i32
    %c0_i32_0 = arith.constant 0 : i32
    return %arg0, %c0_i32 : i32, i32
  }
  func.func @transform_1(%arg0: i32) -> (i32, i32) {
    %c0_i32 = arith.constant 0 : i32
    %c0_i32_0 = arith.constant 0 : i32
    return %arg0, %c0_i32 : i32, i32
  }
}

</mosaic_0001>

<llo_original>
// kernel: tpu_custom_call.1
$region0: #{tpu_custom_call.1}
  #allocation0 [shape = 'u32[]', space=smem, size = 0x4, offset = 0x4, fixed_abs, tag = 'smem constant byte address 0x4 - core index']
  #allocation1 [shape = 'u32[144,128]{1,0:T(1,128)}', space=vmem, size = 0x12000, scoped, tag = 'internal scratch']
  %s0 = inlined_call_operand.hbm [shape: f32[16,16], index: 0, kind: input, shape index: {}]
  %s1 = inlined_call_operand.hbm [shape: f32[16,144], index: 1, kind: output, shape index: {}]
  %s2 = sld [smem:[#allocation0]]
  $region18: #{tpu_custom_call.1} parent=0
    _
  %s4 = ssub.s32 1, %s2
  %s5 = scalar_select 0, %s4, %s2
  $region1: #{tpu_custom_call.1} parent=0
    #allocation2 [shape = 'u8[8192]{0}', space=vmem, size = 0x2000, scoped, tag = 'input window, operand 0, single buffered']
    #allocation3 [shape = 's32[1]{0}', space=sflag, size = 0x4, scoped, tag = 'scoped memory for tpu_custom_call.1']
    #allocation4 [shape = 's32[1]{0}', space=sflag, size = 0x4, scoped, tag = 'scoped memory for tpu_custom_call.1']
    #allocation5 [shape = 'u8[16384]{0}', space=vmem, size = 0x4000, scoped, tag = 'output window, operand 0, single buffered']
    %6 = vsyncpa [#allocation3], 0
    %7 = vsyncpa [#allocation4], 0
    // Predicated region
    $region2: #{tpu_custom_call.1} parent=1 // pred_check
      _
    $region3: #{tpu_custom_call.1} parent=1 // pred_check_branch
      %9 = sbr.rel (0) target = $region5
    $region4: #{tpu_custom_call.1} parent=1 // pred_region
      %s11 = ssub.s32 256, 256
      %12 = vsyncadd [#allocation3], %s11
      %s13 = sshll.u32 [#allocation2], 4
      %s14 = int_to_ptr.vmem [resolvable:$true] %s13
      %19 = dma.hbm_to_vmem [thread:$0]  %s0, 256, %s14, [#allocation3], 128, 128, 8
    $region5: #{tpu_custom_call.1} parent=1 // pred_fallthru
      _
    // Predicated region
    $region6: #{tpu_custom_call.1} parent=1 // pred_check
      _
    $region7: #{tpu_custom_call.1} parent=1 // pred_check_branch
      %21 = sbr.rel (0) target = $region9
    $region8: #{tpu_custom_call.1} parent=1 // pred_region
      %22 = dma.done [#allocation3], 256
    $region9: #{tpu_custom_call.1} parent=1 // pred_fallthru
      _
    %v23 = vld [vmem:[#allocation2] sm:$0xff]
    %v24 = vld [vmem:[#allocation2 + $0x8] sm:$0xff]
    %v25 = vand.u32 2147483647, %v23
    %vm26 = vcmp.le.f32.partialorder %v25, 0.7853982
    %vm27 = vcmp.lt.s32.totalorder %v23, 0
    %v28 = vand.u32 %v23, 2139095040
    %v29 = vshrl.u32 %v28, 23
    %v30 = vsub.s32 %v29, 127
    %v31 = vand.u32 2147483647, %v23
    %v32 = vand.u32 %v31, 8388607
    %v33 = vor.u32 %v32, 8388608
    %v34 = vsub.s32 0, %v33
    %v35 = vadd.s32 %v30, 1
    %vm36 = vcmp.gt.s32.totalorder %v35, 0
    %v37 = vsel %vm36, %v35, 0
    %v38 = vshrl.u32 %v37, 5
    %v39 = vand.u32 %v37, 31
    %v40 = vsub.s32 32, %v39
    %v41 = vshrl.u32 683565275, %v40
    %v42 = vshll.u32 683565275, %v39
    %v43 = vshrl.u32 2475754826, %v40
    %v44 = vor.u32 %v42, %v43
    %v45 = vshll.u32 2475754826, %v39
    %v46 = vshrl.u32 2131351028, %v40
    %v47 = vor.u32 %v45, %v46
    %v48 = vshll.u32 2131351028, %v39
    %v49 = vshrl.u32 2102212464, %v40
    %v50 = vor.u32 %v48, %v49
    %v51 = vshll.u32 2102212464, %v39
    %v52 = vshrl.u32 920167782, %v40
    %v53 = vor.u32 %v51, %v52
    %v54 = vshll.u32 920167782, %v39
    %v55 = vshrl.u32 1326507024, %v40
    %v56 = vor.u32 %v54, %v55
    %vm57 = vcmp.lt.s32.totalorder %v38, 1
    %vm58 = vcmp.lt.s32.totalorder %v38, 2
    %vm59 = vcmp.lt.s32.totalorder %v38, 3
    %vm60 = vcmp.lt.s32.totalorder %v38, 4
    %v61 = vsel %vm57, %v41, %v44
    %v62 = vsel %vm60, %v50, 2102212464
    %v63 = vsel %vm59, %v47, %v62
    %v64 = vsel %vm58, %v61, %v63
    %v65 = vsel %vm57, %v44, %v47
    %v66 = vsel %vm60, %v53, 920167782
    %v67 = vsel %vm59, %v50, %v66
    %v68 = vsel %vm58, %v65, %v67
    %v69 = vsel %vm57, %v47, %v50
    %v70 = vsel %vm60, %v56, 1326507024
    %v71 = vsel %vm59, %v53, %v70
    %v72 = vsel %vm58, %v69, %v71
    %v73 = vshll.u32 %v33, 8
    %v74 = vmul.u32.u64.compose %v73, %v72
    %v75 = vextract.low.u32 %v74
    %v76 = vextract.high.u32 %v74
    %v77 = vmul.u32.u64.compose %v73, %v68
    %v78 = vextract.low.u32 %v77
    %v79 = vextract.high.u32 %v77
    %v80 = vmul.u32 %v73, %v64
    %v81 = vadd.s32 %v76, %v78
    %vm82 = vc.u32 %v76, %v78
    %v83 = vadd.s32 %v79, 1
    %v84 = vsel %vm82, %v83, %v79
    %v85 = vadd.s32 %v80, %v84
    %v86 = vadd.s32 %v85, 536870912
    %v87 = vshrl.u32 %v86, 30
    %v88 = vshll.u32 %v87, 30
    %v89 = vsub.s32 %v85, %v88
    %vm90 = vcmp.lt.s32.totalorder %v89, 0
    %v91 = vsub.s32 0, %v89
    %v92 = vsel %vm90, %v91, %v89
    %v93 = vclz %v92
    %v94 = vsub.s32 %v93, 2
    %vm95 = vcmp.gt.s32.totalorder 0, %v94
    %v96 = vsel %vm95, 0, %v94
    %v97 = vsub.s32 32, %v96
    %v98 = vshll.u32 %v89, %v96
    %v99 = vshrl.u32 %v81, %v97
    %v100 = vor.u32 %v98, %v99
    %v101 = vsub.s32 4294967266, %v96
    %v102 = vadd.s32 %v101, 127
    %v103 = vshll.u32 %v102, 23
    %v104 = vor.u32 4788187, %v103
    %v105 = vand.u32 2147483647, %v104
    %v107 = vcvt.s32.f32 %v100
    %v108 = vmul.f32 %v107, %v105
    %v109 = vxor.u32 %v108, 2147483648
    %v110 = vsel %vm27, %v109, %v108
    %v111 = vsub.s32 4, %v87
    %v112 = vsel %vm27, %v111, %v87
    %v113 = vsel %vm26, %v23, %v110
    %v114 = vsel %vm26, 0, %v112
    %v115 = vcosq.f32.pop %v113
    %v116 = vsinq.f32.pop %v113
    %vm117 = vweird.f32 %v23
    %v118 = vadd.s32 %v114, 3
    %v119 = vand.u32 %v118, 3
    %vm120 = vcmp.lt.s32.totalorder %v119, 2
    %vm121 = vcmp.eq.s32.totalorder %v119, 0
    %v122 = vxor.u32 %v116, 2147483648
    %v123 = vsel %vm121, %v115, %v122
    %vm124 = vcmp.eq.s32.totalorder %v119, 2
    %v125 = vxor.u32 %v115, 2147483648
    %v126 = vsel %vm124, %v125, %v116
    %v127 = vsel %vm120, %v123, %v126
    %v128 = vsel %vm117, nan, %v127
    %v129 = vand.u32 2147483647, %v24
    %vm130 = vcmp.le.f32.partialorder %v129, 0.7853982
    %vm131 = vcmp.lt.s32.totalorder %v24, 0
    %v132 = vand.u32 %v24, 2139095040
    %v133 = vshrl.u32 %v132, 23
    %v134 = vsub.s32 %v133, 127
    %v135 = vand.u32 2147483647, %v24
    %v136 = vand.u32 %v135, 8388607
    %v137 = vor.u32 %v136, 8388608
    %v138 = vsub.s32 0, %v137
    %v139 = vadd.s32 %v134, 1
    %vm140 = vcmp.gt.s32.totalorder %v139, 0
    %v141 = vsel %vm140, %v139, 0
    %v142 = vshrl.u32 %v141, 5
    %v143 = vand.u32 %v141, 31
    %v144 = vsub.s32 32, %v143
    %v145 = vshrl.u32 683565275, %v144
    %v146 = vshll.u32 683565275, %v143
    %v147 = vshrl.u32 2475754826, %v144
    %v148 = vor.u32 %v146, %v147
    %v149 = vshll.u32 2475754826, %v143
    %v150 = vshrl.u32 2131351028, %v144
    %v151 = vor.u32 %v149, %v150
    %v152 = vshll.u32 2131351028, %v143
    %v153 = vshrl.u32 2102212464, %v144
    %v154 = vor.u32 %v152, %v153
    %v155 = vshll.u32 2102212464, %v143
    %v156 = vshrl.u32 920167782, %v144
    %v157 = vor.u32 %v155, %v156
    %v158 = vshll.u32 920167782, %v143
    %v159 = vshrl.u32 1326507024, %v144
    %v160 = vor.u32 %v158, %v159
    %vm161 = vcmp.lt.s32.totalorder %v142, 1
    %vm162 = vcmp.lt.s32.totalorder %v142, 2
    %vm163 = vcmp.lt.s32.totalorder %v142, 3
    %vm164 = vcmp.lt.s32.totalorder %v142, 4
    %v165 = vsel %vm161, %v145, %v148
    %v166 = vsel %vm164, %v154, 2102212464
    %v167 = vsel %vm163, %v151, %v166
    %v168 = vsel %vm162, %v165, %v167
    %v169 = vsel %vm161, %v148, %v151
    %v170 = vsel %vm164, %v157, 920167782
    %v171 = vsel %vm163, %v154, %v170
    %v172 = vsel %vm162, %v169, %v171
    %v173 = vsel %vm161, %v151, %v154
    %v174 = vsel %vm164, %v160, 1326507024
    %v175 = vsel %vm163, %v157, %v174
    %v176 = vsel %vm162, %v173, %v175
    %v177 = vshll.u32 %v137, 8
    %v178 = vmul.u32.u64.compose %v177, %v176
    %v179 = vextract.low.u32 %v178
    %v180 = vextract.high.u32 %v178
    %v181 = vmul.u32.u64.compose %v177, %v172
    %v182 = vextract.low.u32 %v181
    %v183 = vextract.high.u32 %v181
    %v184 = vmul.u32 %v177, %v168
    %v185 = vadd.s32 %v180, %v182
    %vm186 = vc.u32 %v180, %v182
    %v187 = vadd.s32 %v183, 1
    %v188 = vsel %vm186, %v187, %v183
    %v189 = vadd.s32 %v184, %v188
    %v190 = vadd.s32 %v189, 536870912
    %v191 = vshrl.u32 %v190, 30
    %v192 = vshll.u32 %v191, 30
    %v193 = vsub.s32 %v189, %v192
    %vm194 = vcmp.lt.s32.totalorder %v193, 0
    %v195 = vsub.s32 0, %v193
    %v196 = vsel %vm194, %v195, %v193
    %v197 = vclz %v196
    %v198 = vsub.s32 %v197, 2
    %vm199 = vcmp.gt.s32.totalorder 0, %v198
    %v200 = vsel %vm199, 0, %v198
    %v201 = vsub.s32 32, %v200
    %v202 = vshll.u32 %v193, %v200
    %v203 = vshrl.u32 %v185, %v201
    %v204 = vor.u32 %v202, %v203
    %v205 = vsub.s32 4294967266, %v200
    %v206 = vadd.s32 %v205, 127
    %v207 = vshll.u32 %v206, 23
    %v208 = vor.u32 4788187, %v207
    %v209 = vand.u32 2147483647, %v208
    %v211 = vcvt.s32.f32 %v204
    %v212 = vmul.f32 %v211, %v209
    %v213 = vxor.u32 %v212, 2147483648
    %v214 = vsel %vm131, %v213, %v212
    %v215 = vsub.s32 4, %v191
    %v216 = vsel %vm131, %v215, %v191
    %v217 = vsel %vm130, %v24, %v214
    %v218 = vsel %vm130, 0, %v216
    %v219 = vcosq.f32.pop %v217
    %v220 = vsinq.f32.pop %v217
    %vm221 = vweird.f32 %v24
    %v222 = vadd.s32 %v218, 3
    %v223 = vand.u32 %v222, 3
    %vm224 = vcmp.lt.s32.totalorder %v223, 2
    %vm225 = vcmp.eq.s32.totalorder %v223, 0
    %v226 = vxor.u32 %v220, 2147483648
    %v227 = vsel %vm225, %v219, %v226
    %vm228 = vcmp.eq.s32.totalorder %v223, 2
    %v229 = vxor.u32 %v219, 2147483648
    %v230 = vsel %vm228, %v229, %v220
    %v231 = vsel %vm224, %v227, %v230
    %v232 = vsel %vm221, nan, %v231
    %v233 = vand.u32 2147483647, %v23
    %vm234 = vcmp.le.f32.partialorder %v233, 0.7853982
    %vm235 = vcmp.lt.s32.totalorder %v23, 0
    %v236 = vand.u32 %v23, 2139095040
    %v237 = vshrl.u32 %v236, 23
    %v238 = vsub.s32 %v237, 127
    %v239 = vand.u32 2147483647, %v23
    %v240 = vand.u32 %v239, 8388607
    %v241 = vor.u32 %v240, 8388608
    %v242 = vsub.s32 0, %v241
    %v243 = vadd.s32 %v238, 1
    %vm244 = vcmp.gt.s32.totalorder %v243, 0
    %v245 = vsel %vm244, %v243, 0
    %v246 = vshrl.u32 %v245, 5
    %v247 = vand.u32 %v245, 31
    %v248 = vsub.s32 32, %v247
    %v249 = vshrl.u32 683565275, %v248
    %v250 = vshll.u32 683565275, %v247
    %v251 = vshrl.u32 2475754826, %v248
    %v252 = vor.u32 %v250, %v251
    %v253 = vshll.u32 2475754826, %v247
    %v254 = vshrl.u32 2131351028, %v248
    %v255 = vor.u32 %v253, %v254
    %v256 = vshll.u32 2131351028, %v247
    %v257 = vshrl.u32 2102212464, %v248
    %v258 = vor.u32 %v256, %v257
    %v259 = vshll.u32 2102212464, %v247
    %v260 = vshrl.u32 920167782, %v248
    %v261 = vor.u32 %v259, %v260
    %v262 = vshll.u32 920167782, %v247
    %v263 = vshrl.u32 1326507024, %v248
    %v264 = vor.u32 %v262, %v263
    %vm265 = vcmp.lt.s32.totalorder %v246, 1
    %vm266 = vcmp.lt.s32.totalorder %v246, 2
    %vm267 = vcmp.lt.s32.totalorder %v246, 3
    %vm268 = vcmp.lt.s32.totalorder %v246, 4
    %v269 = vsel %vm265, %v249, %v252
    %v270 = vsel %vm268, %v258, 2102212464
    %v271 = vsel %vm267, %v255, %v270
    %v272 = vsel %vm266, %v269, %v271
    %v273 = vsel %vm265, %v252, %v255
    %v274 = vsel %vm268, %v261, 920167782
    %v275 = vsel %vm267, %v258, %v274
    %v276 = vsel %vm266, %v273, %v275
    %v277 = vsel %vm265, %v255, %v258
    %v278 = vsel %vm268, %v264, 1326507024
    %v279 = vsel %vm267, %v261, %v278
    %v280 = vsel %vm266, %v277, %v279
    %v281 = vshll.u32 %v241, 8
    %v282 = vmul.u32.u64.compose %v281, %v280
    %v283 = vextract.low.u32 %v282
    %v284 = vextract.high.u32 %v282
    %v285 = vmul.u32.u64.compose %v281, %v276
    %v286 = vextract.low.u32 %v285
    %v287 = vextract.high.u32 %v285
    %v288 = vmul.u32 %v281, %v272
    %v289 = vadd.s32 %v284, %v286
    %vm290 = vc.u32 %v284, %v286
    %v291 = vadd.s32 %v287, 1
    %v292 = vsel %vm290, %v291, %v287
    %v293 = vadd.s32 %v288, %v292
    %v294 = vadd.s32 %v293, 536870912
    %v295 = vshrl.u32 %v294, 30
    %v296 = vshll.u32 %v295, 30
    %v297 = vsub.s32 %v293, %v296
    %vm298 = vcmp.lt.s32.totalorder %v297, 0
    %v299 = vsub.s32 0, %v297
    %v300 = vsel %vm298, %v299, %v297
    %v301 = vclz %v300
    %v302 = vsub.s32 %v301, 2
    %vm303 = vcmp.gt.s32.totalorder 0, %v302
    %v304 = vsel %vm303, 0, %v302
    %v305 = vsub.s32 32, %v304
    %v306 = vshll.u32 %v297, %v304
    %v307 = vshrl.u32 %v289, %v305
    %v308 = vor.u32 %v306, %v307
    %v309 = vsub.s32 4294967266, %v304
    %v310 = vadd.s32 %v309, 127
    %v311 = vshll.u32 %v310, 23
    %v312 = vor.u32 4788187, %v311
    %v313 = vand.u32 2147483647, %v312
    %v315 = vcvt.s32.f32 %v308
    %v316 = vmul.f32 %v315, %v313
    %v317 = vxor.u32 %v316, 2147483648
    %v318 = vsel %vm235, %v317, %v316
    %v319 = vsub.s32 4, %v295
    %v320 = vsel %vm235, %v319, %v295
    %v321 = vsel %vm234, %v23, %v318
    %v322 = vsel %vm234, 0, %v320
    %v323 = vcosq.f32.pop %v321
    %v324 = vsinq.f32.pop %v321
    %vm325 = vweird.f32 %v23
    %v326 = vand.u32 %v322, 3
    %vm327 = vcmp.lt.s32.totalorder %v326, 2
    %vm328 = vcmp.eq.s32.totalorder %v326, 0
    %v329 = vxor.u32 %v324, 2147483648
    %v330 = vsel %vm328, %v323, %v329
    %vm331 = vcmp.eq.s32.totalorder %v326, 2
    %v332 = vxor.u32 %v323, 2147483648
    %v333 = vsel %vm331, %v332, %v324
    %v334 = vsel %vm327, %v330, %v333
    %v335 = vsel %vm325, nan, %v334
    %v336 = vand.u32 2147483647, %v24
    %vm337 = vcmp.le.f32.partialorder %v336, 0.7853982
    %vm338 = vcmp.lt.s32.totalorder %v24, 0
    %v339 = vand.u32 %v24, 2139095040
    %v340 = vshrl.u32 %v339, 23
    %v341 = vsub.s32 %v340, 127
    %v342 = vand.u32 2147483647, %v24
    %v343 = vand.u32 %v342, 8388607
    %v344 = vor.u32 %v343, 8388608
    %v345 = vsub.s32 0, %v344
    %v346 = vadd.s32 %v341, 1
    %vm347 = vcmp.gt.s32.totalorder %v346, 0
    %v348 = vsel %vm347, %v346, 0
    %v349 = vshrl.u32 %v348, 5
    %v350 = vand.u32 %v348, 31
    %v351 = vsub.s32 32, %v350
    %v352 = vshrl.u32 683565275, %v351
    %v353 = vshll.u32 683565275, %v350
    %v354 = vshrl.u32 2475754826, %v351
    %v355 = vor.u32 %v353, %v354
    %v356 = vshll.u32 2475754826, %v350
    %v357 = vshrl.u32 2131351028, %v351
    %v358 = vor.u32 %v356, %v357
    %v359 = vshll.u32 2131351028, %v350
    %v360 = vshrl.u32 2102212464, %v351
    %v361 = vor.u32 %v359, %v360
    %v362 = vshll.u32 2102212464, %v350
    %v363 = vshrl.u32 920167782, %v351
    %v364 = vor.u32 %v362, %v363
    %v365 = vshll.u32 920167782, %v350
    %v366 = vshrl.u32 1326507024, %v351
    %v367 = vor.u32 %v365, %v366
    %vm368 = vcmp.lt.s32.totalorder %v349, 1
    %vm369 = vcmp.lt.s32.totalorder %v349, 2
    %vm370 = vcmp.lt.s32.totalorder %v349, 3
    %vm371 = vcmp.lt.s32.totalorder %v349, 4
    %v372 = vsel %vm368, %v352, %v355
    %v373 = vsel %vm371, %v361, 2102212464
    %v374 = vsel %vm370, %v358, %v373
    %v375 = vsel %vm369, %v372, %v374
    %v376 = vsel %vm368, %v355, %v358
    %v377 = vsel %vm371, %v364, 920167782
    %v378 = vsel %vm370, %v361, %v377
    %v379 = vsel %vm369, %v376, %v378
    %v380 = vsel %vm368, %v358, %v361
    %v381 = vsel %vm371, %v367, 1326507024
    %v382 = vsel %vm370, %v364, %v381
    %v383 = vsel %vm369, %v380, %v382
    %v384 = vshll.u32 %v344, 8
    %v385 = vmul.u32.u64.compose %v384, %v383
    %v386 = vextract.low.u32 %v385
    %v387 = vextract.high.u32 %v385
    %v388 = vmul.u32.u64.compose %v384, %v379
    %v389 = vextract.low.u32 %v388
    %v390 = vextract.high.u32 %v388
    %v391 = vmul.u32 %v384, %v375
    %v392 = vadd.s32 %v387, %v389
    %vm393 = vc.u32 %v387, %v389
    %v394 = vadd.s32 %v390, 1
    %v395 = vsel %vm393, %v394, %v390
    %v396 = vadd.s32 %v391, %v395
    %v397 = vadd.s32 %v396, 536870912
    %v398 = vshrl.u32 %v397, 30
    %v399 = vshll.u32 %v398, 30
    %v400 = vsub.s32 %v396, %v399
    %vm401 = vcmp.lt.s32.totalorder %v400, 0
    %v402 = vsub.s32 0, %v400
    %v403 = vsel %vm401, %v402, %v400
    %v404 = vclz %v403
    %v405 = vsub.s32 %v404, 2
    %vm406 = vcmp.gt.s32.totalorder 0, %v405
    %v407 = vsel %vm406, 0, %v405
    %v408 = vsub.s32 32, %v407
    %v409 = vshll.u32 %v400, %v407
    %v410 = vshrl.u32 %v392, %v408
    %v411 = vor.u32 %v409, %v410
    %v412 = vsub.s32 4294967266, %v407
    %v413 = vadd.s32 %v412, 127
    %v414 = vshll.u32 %v413, 23
    %v415 = vor.u32 4788187, %v414
    %v416 = vand.u32 2147483647, %v415
    %v418 = vcvt.s32.f32 %v411
    %v419 = vmul.f32 %v418, %v416
    %v420 = vxor.u32 %v419, 2147483648
    %v421 = vsel %vm338, %v420, %v419
    %v422 = vsub.s32 4, %v398
    %v423 = vsel %vm338, %v422, %v398
    %v424 = vsel %vm337, %v24, %v421
    %v425 = vsel %vm337, 0, %v423
    %v426 = vcosq.f32.pop %v424
    %v427 = vsinq.f32.pop %v424
    %vm428 = vweird.f32 %v24
    %v429 = vand.u32 %v425, 3
    %vm430 = vcmp.lt.s32.totalorder %v429, 2
    %vm431 = vcmp.eq.s32.totalorder %v429, 0
    %v432 = vxor.u32 %v427, 2147483648
    %v433 = vsel %vm431, %v426, %v432
    %vm434 = vcmp.eq.s32.totalorder %v429, 2
    %v435 = vxor.u32 %v426, 2147483648
    %v436 = vsel %vm434, %v435, %v427
    %v437 = vsel %vm430, %v433, %v436
    %v438 = vsel %vm428, nan, %v437
    %v439 = vmul.f32 %v23, 2.0
    %v440 = vmul.f32 %v24, 2.0
    %v441 = vand.u32 2147483647, %v439
    %vm442 = vcmp.le.f32.partialorder %v441, 0.7853982
    %vm443 = vcmp.lt.s32.totalorder %v439, 0
    %v444 = vand.u32 %v439, 2139095040
    %v445 = vshrl.u32 %v444, 23
    %v446 = vsub.s32 %v445, 127
    %v447 = vand.u32 2147483647, %v439
    %v448 = vand.u32 %v447, 8388607
    %v449 = vor.u32 %v448, 8388608
    %v450 = vsub.s32 0, %v449
    %v451 = vadd.s32 %v446, 1
    %vm452 = vcmp.gt.s32.totalorder %v451, 0
    %v453 = vsel %vm452, %v451, 0
    %v454 = vshrl.u32 %v453, 5
    %v455 = vand.u32 %v453, 31
    %v456 = vsub.s32 32, %v455
    %v457 = vshrl.u32 683565275, %v456
    %v458 = vshll.u32 683565275, %v455
    %v459 = vshrl.u32 2475754826, %v456
    %v460 = vor.u32 %v458, %v459
    %v461 = vshll.u32 2475754826, %v455
    %v462 = vshrl.u32 2131351028, %v456
    %v463 = vor.u32 %v461, %v462
    %v464 = vshll.u32 2131351028, %v455
    %v465 = vshrl.u32 2102212464, %v456
    %v466 = vor.u32 %v464, %v465
    %v467 = vshll.u32 2102212464, %v455
    %v468 = vshrl.u32 920167782, %v456
    %v469 = vor.u32 %v467, %v468
    %v470 = vshll.u32 920167782, %v455
    %v471 = vshrl.u32 1326507024, %v456
    %v472 = vor.u32 %v470, %v471
    %vm473 = vcmp.lt.s32.totalorder %v454, 1
    %vm474 = vcmp.lt.s32.totalorder %v454, 2
    %vm475 = vcmp.lt.s32.totalorder %v454, 3
    %vm476 = vcmp.lt.s32.totalorder %v454, 4
    %v477 = vsel %vm473, %v457, %v460
    %v478 = vsel %vm476, %v466, 2102212464
    %v479 = vsel %vm475, %v463, %v478
    %v480 = vsel %vm474, %v477, %v479
    %v481 = vsel %vm473, %v460, %v463
    %v482 = vsel %vm476, %v469, 920167782
    %v483 = vsel %vm475, %v466, %v482
    %v484 = vsel %vm474, %v481, %v483
    %v485 = vsel %vm473, %v463, %v466
    %v486 = vsel %vm476, %v472, 1326507024
    %v487 = vsel %vm475, %v469, %v486
    %v488 = vsel %vm474, %v485, %v487
    %v489 = vshll.u32 %v449, 8
    %v490 = vmul.u32.u64.compose %v489, %v488
    %v491 = vextract.low.u32 %v490
    %v492 = vextract.high.u32 %v490
    %v493 = vmul.u32.u64.compose %v489, %v484
    %v494 = vextract.low.u32 %v493
    %v495 = vextract.high.u32 %v493
    %v496 = vmul.u32 %v489, %v480
    %v497 = vadd.s32 %v492, %v494
    %vm498 = vc.u32 %v492, %v494
    %v499 = vadd.s32 %v495, 1
    %v500 = vsel %vm498, %v499, %v495
    %v501 = vadd.s32 %v496, %v500
    %v502 = vadd.s32 %v501, 536870912
    %v503 = vshrl.u32 %v502, 30
    %v504 = vshll.u32 %v503, 30
    %v505 = vsub.s32 %v501, %v504
    %vm506 = vcmp.lt.s32.totalorder %v505, 0
    %v507 = vsub.s32 0, %v505
    %v508 = vsel %vm506, %v507, %v505
    %v509 = vclz %v508
    %v510 = vsub.s32 %v509, 2
    %vm511 = vcmp.gt.s32.totalorder 0, %v510
    %v512 = vsel %vm511, 0, %v510
    %v513 = vsub.s32 32, %v512
    %v514 = vshll.u32 %v505, %v512
    %v515 = vshrl.u32 %v497, %v513
    %v516 = vor.u32 %v514, %v515
    %v517 = vsub.s32 4294967266, %v512
    %v518 = vadd.s32 %v517, 127
    %v519 = vshll.u32 %v518, 23
    %v520 = vor.u32 4788187, %v519
    %v521 = vand.u32 2147483647, %v520
    %v523 = vcvt.s32.f32 %v516
    %v524 = vmul.f32 %v523, %v521
    %v525 = vxor.u32 %v524, 2147483648
    %v526 = vsel %vm443, %v525, %v524
    %v527 = vsub.s32 4, %v503
    %v528 = vsel %vm443, %v527, %v503
    %v529 = vsel %vm442, %v439, %v526
    %v530 = vsel %vm442, 0, %v528
    %v531 = vcosq.f32.pop %v529
    %v532 = vsinq.f32.pop %v529
    %vm533 = vweird.f32 %v439
    %v534 = vadd.s32 %v530, 3
    %v535 = vand.u32 %v534, 3
    %vm536 = vcmp.lt.s32.totalorder %v535, 2
    %vm537 = vcmp.eq.s32.totalorder %v535, 0
    %v538 = vxor.u32 %v532, 2147483648
    %v539 = vsel %vm537, %v531, %v538
    %vm540 = vcmp.eq.s32.totalorder %v535, 2
    %v541 = vxor.u32 %v531, 2147483648
    %v542 = vsel %vm540, %v541, %v532
    %v543 = vsel %vm536, %v539, %v542
    %v544 = vsel %vm533, nan, %v543
    %v545 = vand.u32 2147483647, %v440
    %vm546 = vcmp.le.f32.partialorder %v545, 0.7853982
    %vm547 = vcmp.lt.s32.totalorder %v440, 0
    %v548 = vand.u32 %v440, 2139095040
    %v549 = vshrl.u32 %v548, 23
    %v550 = vsub.s32 %v549, 127
    %v551 = vand.u32 2147483647, %v440
    %v552 = vand.u32 %v551, 8388607
    %v553 = vor.u32 %v552, 8388608
    %v554 = vsub.s32 0, %v553
    %v555 = vadd.s32 %v550, 1
    %vm556 = vcmp.gt.s32.totalorder %v555, 0
    %v557 = vsel %vm556, %v555, 0
    %v558 = vshrl.u32 %v557, 5
    %v559 = vand.u32 %v557, 31
    %v560 = vsub.s32 32, %v559
    %v561 = vshrl.u32 683565275, %v560
    %v562 = vshll.u32 683565275, %v559
    %v563 = vshrl.u32 2475754826, %v560
    %v564 = vor.u32 %v562, %v563
    %v565 = vshll.u32 2475754826, %v559
    %v566 = vshrl.u32 2131351028, %v560
    %v567 = vor.u32 %v565, %v566
    %v568 = vshll.u32 2131351028, %v559
    %v569 = vshrl.u32 2102212464, %v560
    %v570 = vor.u32 %v568, %v569
    %v571 = vshll.u32 2102212464, %v559
    %v572 = vshrl.u32 920167782, %v560
    %v573 = vor.u32 %v571, %v572
    %v574 = vshll.u32 920167782, %v559
    %v575 = vshrl.u32 1326507024, %v560
    %v576 = vor.u32 %v574, %v575
    %vm577 = vcmp.lt.s32.totalorder %v558, 1
    %vm578 = vcmp.lt.s32.totalorder %v558, 2
    %vm579 = vcmp.lt.s32.totalorder %v558, 3
    %vm580 = vcmp.lt.s32.totalorder %v558, 4
    %v581 = vsel %vm577, %v561, %v564
    %v582 = vsel %vm580, %v570, 2102212464
    %v583 = vsel %vm579, %v567, %v582
    %v584 = vsel %vm578, %v581, %v583
    %v585 = vsel %vm577, %v564, %v567
    %v586 = vsel %vm580, %v573, 920167782
    %v587 = vsel %vm579, %v570, %v586
    %v588 = vsel %vm578, %v585, %v587
    %v589 = vsel %vm577, %v567, %v570
    %v590 = vsel %vm580, %v576, 1326507024
    %v591 = vsel %vm579, %v573, %v590
    %v592 = vsel %vm578, %v589, %v591
    %v593 = vshll.u32 %v553, 8
    %v594 = vmul.u32.u64.compose %v593, %v592
    %v595 = vextract.low.u32 %v594
    %v596 = vextract.high.u32 %v594
    %v597 = vmul.u32.u64.compose %v593, %v588
    %v598 = vextract.low.u32 %v597
    %v599 = vextract.high.u32 %v597
    %v600 = vmul.u32 %v593, %v584
    %v601 = vadd.s32 %v596, %v598
    %vm602 = vc.u32 %v596, %v598
    %v603 = vadd.s32 %v599, 1
    %v604 = vsel %vm602, %v603, %v599
    %v605 = vadd.s32 %v600, %v604
    %v606 = vadd.s32 %v605, 536870912
    %v607 = vshrl.u32 %v606, 30
    %v608 = vshll.u32 %v607, 30
    %v609 = vsub.s32 %v605, %v608
    %vm610 = vcmp.lt.s32.totalorder %v609, 0
    %v611 = vsub.s32 0, %v609
    %v612 = vsel %vm610, %v611, %v609
    %v613 = vclz %v612
    %v614 = vsub.s32 %v613, 2
    %vm615 = vcmp.gt.s32.totalorder 0, %v614
    %v616 = vsel %vm615, 0, %v614
    %v617 = vsub.s32 32, %v616
    %v618 = vshll.u32 %v609, %v616
    %v619 = vshrl.u32 %v601, %v617
    %v620 = vor.u32 %v618, %v619
    %v621 = vsub.s32 4294967266, %v616
    %v622 = vadd.s32 %v621, 127
    %v623 = vshll.u32 %v622, 23
    %v624 = vor.u32 4788187, %v623
    %v625 = vand.u32 2147483647, %v624
    %v627 = vcvt.s32.f32 %v620
    %v628 = vmul.f32 %v627, %v625
    %v629 = vxor.u32 %v628, 2147483648
    %v630 = vsel %vm547, %v629, %v628
    %v631 = vsub.s32 4, %v607
    %v632 = vsel %vm547, %v631, %v607
    %v633 = vsel %vm546, %v440, %v630
    %v634 = vsel %vm546, 0, %v632
    %v635 = vcosq.f32.pop %v633
    %v636 = vsinq.f32.pop %v633
    %vm637 = vweird.f32 %v440
    %v638 = vadd.s32 %v634, 3
    %v639 = vand.u32 %v638, 3
    %vm640 = vcmp.lt.s32.totalorder %v639, 2
    %vm641 = vcmp.eq.s32.totalorder %v639, 0
    %v642 = vxor.u32 %v636, 2147483648
    %v643 = vsel %vm641, %v635, %v642
    %vm644 = vcmp.eq.s32.totalorder %v639, 2
    %v645 = vxor.u32 %v635, 2147483648
    %v646 = vsel %vm644, %v645, %v636
    %v647 = vsel %vm640, %v643, %v646
    %v648 = vsel %vm637, nan, %v647
    %v649 = vand.u32 2147483647, %v439
    %vm650 = vcmp.le.f32.partialorder %v649, 0.7853982
    %vm651 = vcmp.lt.s32.totalorder %v439, 0
    %v652 = vand.u32 %v439, 2139095040
    %v653 = vshrl.u32 %v652, 23
    %v654 = vsub.s32 %v653, 127
    %v655 = vand.u32 2147483647, %v439
    %v656 = vand.u32 %v655, 8388607
    %v657 = vor.u32 %v656, 8388608
    %v658 = vsub.s32 0, %v657
    %v659 = vadd.s32 %v654, 1
    %vm660 = vcmp.gt.s32.totalorder %v659, 0
    %v661 = vsel %vm660, %v659, 0
    %v662 = vshrl.u32 %v661, 5
    %v663 = vand.u32 %v661, 31
    %v664 = vsub.s32 32, %v663
    %v665 = vshrl.u32 683565275, %v664
    %v666 = vshll.u32 683565275, %v663
    %v667 = vshrl.u32 2475754826, %v664
    %v668 = vor.u32 %v666, %v667
    %v669 = vshll.u32 2475754826, %v663
    %v670 = vshrl.u32 2131351028, %v664
    %v671 = vor.u32 %v669, %v670
    %v672 = vshll.u32 2131351028, %v663
    %v673 = vshrl.u32 2102212464, %v664
    %v674 = vor.u32 %v672, %v673
    %v675 = vshll.u32 2102212464, %v663
    %v676 = vshrl.u32 920167782, %v664
    %v677 = vor.u32 %v675, %v676
    %v678 = vshll.u32 920167782, %v663
    %v679 = vshrl.u32 1326507024, %v664
    %v680 = vor.u32 %v678, %v679
    %vm681 = vcmp.lt.s32.totalorder %v662, 1
    %vm682 = vcmp.lt.s32.totalorder %v662, 2
    %vm683 = vcmp.lt.s32.totalorder %v662, 3
    %vm684 = vcmp.lt.s32.totalorder %v662, 4
    %v685 = vsel %vm681, %v665, %v668
    %v686 = vsel %vm684, %v674, 2102212464
    %v687 = vsel %vm683, %v671, %v686
    %v688 = vsel %vm682, %v685, %v687
    %v689 = vsel %vm681, %v668, %v671
    %v690 = vsel %vm684, %v677, 920167782
    %v691 = vsel %vm683, %v674, %v690
    %v692 = vsel %vm682, %v689, %v691
    %v693 = vsel %vm681, %v671, %v674
    %v694 = vsel %vm684, %v680, 1326507024
    %v695 = vsel %vm683, %v677, %v694
    %v696 = vsel %vm682, %v693, %v695
    %v697 = vshll.u32 %v657, 8
    %v698 = vmul.u32.u64.compose %v697, %v696
    %v699 = vextract.low.u32 %v698
    %v700 = vextract.high.u32 %v698
    %v701 = vmul.u32.u64.compose %v697, %v692
    %v702 = vextract.low.u32 %v701
    %v703 = vextract.high.u32 %v701
    %v704 = vmul.u32 %v697, %v688
    %v705 = vadd.s32 %v700, %v702
    %vm706 = vc.u32 %v700, %v702
    %v707 = vadd.s32 %v703, 1
    %v708 = vsel %vm706, %v707, %v703
    %v709 = vadd.s32 %v704, %v708
    %v710 = vadd.s32 %v709, 536870912
    %v711 = vshrl.u32 %v710, 30
    %v712 = vshll.u32 %v711, 30
    %v713 = vsub.s32 %v709, %v712
    %vm714 = vcmp.lt.s32.totalorder %v713, 0
    %v715 = vsub.s32 0, %v713
    %v716 = vsel %vm714, %v715, %v713
    %v717 = vclz %v716
    %v718 = vsub.s32 %v717, 2
    %vm719 = vcmp.gt.s32.totalorder 0, %v718
    %v720 = vsel %vm719, 0, %v718
    %v721 = vsub.s32 32, %v720
    %v722 = vshll.u32 %v713, %v720
    %v723 = vshrl.u32 %v705, %v721
    %v724 = vor.u32 %v722, %v723
    %v725 = vsub.s32 4294967266, %v720
    %v726 = vadd.s32 %v725, 127
    %v727 = vshll.u32 %v726, 23
    %v728 = vor.u32 4788187, %v727
    %v729 = vand.u32 2147483647, %v728
    %v731 = vcvt.s32.f32 %v724
    %v732 = vmul.f32 %v731, %v729
    %v733 = vxor.u32 %v732, 2147483648
    %v734 = vsel %vm651, %v733, %v732
    %v735 = vsub.s32 4, %v711
    %v736 = vsel %vm651, %v735, %v711
    %v737 = vsel %vm650, %v439, %v734
    %v738 = vsel %vm650, 0, %v736
    %v739 = vcosq.f32.pop %v737
    %v740 = vsinq.f32.pop %v737
    %vm741 = vweird.f32 %v439
    %v742 = vand.u32 %v738, 3
    %vm743 = vcmp.lt.s32.totalorder %v742, 2
    %vm744 = vcmp.eq.s32.totalorder %v742, 0
    %v745 = vxor.u32 %v740, 2147483648
    %v746 = vsel %vm744, %v739, %v745
    %vm747 = vcmp.eq.s32.totalorder %v742, 2
    %v748 = vxor.u32 %v739, 2147483648
    %v749 = vsel %vm747, %v748, %v740
    %v750 = vsel %vm743, %v746, %v749
    %v751 = vsel %vm741, nan, %v750
    %v752 = vand.u32 2147483647, %v440
    %vm753 = vcmp.le.f32.partialorder %v752, 0.7853982
    %vm754 = vcmp.lt.s32.totalorder %v440, 0
    %v755 = vand.u32 %v440, 2139095040
    %v756 = vshrl.u32 %v755, 23
    %v757 = vsub.s32 %v756, 127
    %v758 = vand.u32 2147483647, %v440
    %v759 = vand.u32 %v758, 8388607
    %v760 = vor.u32 %v759, 8388608
    %v761 = vsub.s32 0, %v760
    %v762 = vadd.s32 %v757, 1
    %vm763 = vcmp.gt.s32.totalorder %v762, 0
    %v764 = vsel %vm763, %v762, 0
    %v765 = vshrl.u32 %v764, 5
    %v766 = vand.u32 %v764, 31
    %v767 = vsub.s32 32, %v766
    %v768 = vshrl.u32 683565275, %v767
    %v769 = vshll.u32 683565275, %v766
    %v770 = vshrl.u32 2475754826, %v767
    %v771 = vor.u32 %v769, %v770
    %v772 = vshll.u32 2475754826, %v766
    %v773 = vshrl.u32 2131351028, %v767
    %v774 = vor.u32 %v772, %v773
    %v775 = vshll.u32 2131351028, %v766
    %v776 = vshrl.u32 2102212464, %v767
    %v777 = vor.u32 %v775, %v776
    %v778 = vshll.u32 2102212464, %v766
    %v779 = vshrl.u32 920167782, %v767
    %v780 = vor.u32 %v778, %v779
    %v781 = vshll.u32 920167782, %v766
    %v782 = vshrl.u32 1326507024, %v767
    %v783 = vor.u32 %v781, %v782
    %vm784 = vcmp.lt.s32.totalorder %v765, 1
    %vm785 = vcmp.lt.s32.totalorder %v765, 2
    %vm786 = vcmp.lt.s32.totalorder %v765, 3
    %vm787 = vcmp.lt.s32.totalorder %v765, 4
    %v788 = vsel %vm784, %v768, %v771
    %v789 = vsel %vm787, %v777, 2102212464
    %v790 = vsel %vm786, %v774, %v789
    %v791 = vsel %vm785, %v788, %v790
    %v792 = vsel %vm784, %v771, %v774
    %v793 = vsel %vm787, %v780, 920167782
    %v794 = vsel %vm786, %v777, %v793
    %v795 = vsel %vm785, %v792, %v794
    %v796 = vsel %vm784, %v774, %v777
    %v797 = vsel %vm787, %v783, 1326507024
    %v798 = vsel %vm786, %v780, %v797
    %v799 = vsel %vm785, %v796, %v798
    %v800 = vshll.u32 %v760, 8
    %v801 = vmul.u32.u64.compose %v800, %v799
    %v802 = vextract.low.u32 %v801
    %v803 = vextract.high.u32 %v801
    %v804 = vmul.u32.u64.compose %v800, %v795
    %v805 = vextract.low.u32 %v804
    %v806 = vextract.high.u32 %v804
    %v807 = vmul.u32 %v800, %v791
    %v808 = vadd.s32 %v803, %v805
    %vm809 = vc.u32 %v803, %v805
    %v810 = vadd.s32 %v806, 1
    %v811 = vsel %vm809, %v810, %v806
    %v812 = vadd.s32 %v807, %v811
    %v813 = vadd.s32 %v812, 536870912
    %v814 = vshrl.u32 %v813, 30
    %v815 = vshll.u32 %v814, 30
    %v816 = vsub.s32 %v812, %v815
    %vm817 = vcmp.lt.s32.totalorder %v816, 0
    %v818 = vsub.s32 0, %v816
    %v819 = vsel %vm817, %v818, %v816
    %v820 = vclz %v819
    %v821 = vsub.s32 %v820, 2
    %vm822 = vcmp.gt.s32.totalorder 0, %v821
    %v823 = vsel %vm822, 0, %v821
    %v824 = vsub.s32 32, %v823
    %v825 = vshll.u32 %v816, %v823
    %v826 = vshrl.u32 %v808, %v824
    %v827 = vor.u32 %v825, %v826
    %v828 = vsub.s32 4294967266, %v823
    %v829 = vadd.s32 %v828, 127
    %v830 = vshll.u32 %v829, 23
    %v831 = vor.u32 4788187, %v830
    %v832 = vand.u32 2147483647, %v831
    %v834 = vcvt.s32.f32 %v827
    %v835 = vmul.f32 %v834, %v832
    %v836 = vxor.u32 %v835, 2147483648
    %v837 = vsel %vm754, %v836, %v835
    %v838 = vsub.s32 4, %v814
    %v839 = vsel %vm754, %v838, %v814
    %v840 = vsel %vm753, %v440, %v837
    %v841 = vsel %vm753, 0, %v839
    %v842 = vcosq.f32.pop %v840
    %v843 = vsinq.f32.pop %v840
    %vm844 = vweird.f32 %v440
    %v845 = vand.u32 %v841, 3
    %vm846 = vcmp.lt.s32.totalorder %v845, 2
    %vm847 = vcmp.eq.s32.totalorder %v845, 0
    %v848 = vxor.u32 %v843, 2147483648
    %v849 = vsel %vm847, %v842, %v848
    %vm850 = vcmp.eq.s32.totalorder %v845, 2
    %v851 = vxor.u32 %v842, 2147483648
    %v852 = vsel %vm850, %v851, %v843
    %v853 = vsel %vm846, %v849, %v852
    %v854 = vsel %vm844, nan, %v853
    %v855 = vmul.f32 %v23, 4.0
    %v856 = vmul.f32 %v24, 4.0
    %v857 = vand.u32 2147483647, %v855
    %vm858 = vcmp.le.f32.partialorder %v857, 0.7853982
    %vm859 = vcmp.lt.s32.totalorder %v855, 0
    %v860 = vand.u32 %v855, 2139095040
    %v861 = vshrl.u32 %v860, 23
    %v862 = vsub.s32 %v861, 127
    %v863 = vand.u32 2147483647, %v855
    %v864 = vand.u32 %v863, 8388607
    %v865 = vor.u32 %v864, 8388608
    %v866 = vsub.s32 0, %v865
    %v867 = vadd.s32 %v862, 1
    %vm868 = vcmp.gt.s32.totalorder %v867, 0
    %v869 = vsel %vm868, %v867, 0
    %v870 = vshrl.u32 %v869, 5
    %v871 = vand.u32 %v869, 31
    %v872 = vsub.s32 32, %v871
    %v873 = vshrl.u32 683565275, %v872
    %v874 = vshll.u32 683565275, %v871
    %v875 = vshrl.u32 2475754826, %v872
    %v876 = vor.u32 %v874, %v875
    %v877 = vshll.u32 2475754826, %v871
    %v878 = vshrl.u32 2131351028, %v872
    %v879 = vor.u32 %v877, %v878
    %v880 = vshll.u32 2131351028, %v871
    %v881 = vshrl.u32 2102212464, %v872
    %v882 = vor.u32 %v880, %v881
    %v883 = vshll.u32 2102212464, %v871
    %v884 = vshrl.u32 920167782, %v872
    %v885 = vor.u32 %v883, %v884
    %v886 = vshll.u32 920167782, %v871
    %v887 = vshrl.u32 1326507024, %v872
    %v888 = vor.u32 %v886, %v887
    %vm889 = vcmp.lt.s32.totalorder %v870, 1
    %vm890 = vcmp.lt.s32.totalorder %v870, 2
    %vm891 = vcmp.lt.s32.totalorder %v870, 3
    %vm892 = vcmp.lt.s32.totalorder %v870, 4
    %v893 = vsel %vm889, %v873, %v876
    %v894 = vsel %vm892, %v882, 2102212464
    %v895 = vsel %vm891, %v879, %v894
    %v896 = vsel %vm890, %v893, %v895
    %v897 = vsel %vm889, %v876, %v879
    %v898 = vsel %vm892, %v885, 920167782
    %v899 = vsel %vm891, %v882, %v898
    %v900 = vsel %vm890, %v897, %v899
    %v901 = vsel %vm889, %v879, %v882
    %v902 = vsel %vm892, %v888, 1326507024
    %v903 = vsel %vm891, %v885, %v902
    %v904 = vsel %vm890, %v901, %v903
    %v905 = vshll.u32 %v865, 8
    %v906 = vmul.u32.u64.compose %v905, %v904
    %v907 = vextract.low.u32 %v906
    %v908 = vextract.high.u32 %v906
    %v909 = vmul.u32.u64.compose %v905, %v900
    %v910 = vextract.low.u32 %v909
    %v911 = vextract.high.u32 %v909
    %v912 = vmul.u32 %v905, %v896
    %v913 = vadd.s32 %v908, %v910
    %vm914 = vc.u32 %v908, %v910
    %v915 = vadd.s32 %v911, 1
    %v916 = vsel %vm914, %v915, %v911
    %v917 = vadd.s32 %v912, %v916
    %v918 = vadd.s32 %v917, 536870912
    %v919 = vshrl.u32 %v918, 30
    %v920 = vshll.u32 %v919, 30
    %v921 = vsub.s32 %v917, %v920
    %vm922 = vcmp.lt.s32.totalorder %v921, 0
    %v923 = vsub.s32 0, %v921
    %v924 = vsel %vm922, %v923, %v921
    %v925 = vclz %v924
    %v926 = vsub.s32 %v925, 2
    %vm927 = vcmp.gt.s32.totalorder 0, %v926
    %v928 = vsel %vm927, 0, %v926
    %v929 = vsub.s32 32, %v928
    %v930 = vshll.u32 %v921, %v928
    %v931 = vshrl.u32 %v913, %v929
    %v932 = vor.u32 %v930, %v931
    %v933 = vsub.s32 4294967266, %v928
    %v934 = vadd.s32 %v933, 127
    %v935 = vshll.u32 %v934, 23
    %v936 = vor.u32 4788187, %v935
    %v937 = vand.u32 2147483647, %v936
    %v939 = vcvt.s32.f32 %v932
    %v940 = vmul.f32 %v939, %v937
    %v941 = vxor.u32 %v940, 2147483648
    %v942 = vsel %vm859, %v941, %v940
    %v943 = vsub.s32 4, %v919
    %v944 = vsel %vm859, %v943, %v919
    %v945 = vsel %vm858, %v855, %v942
    %v946 = vsel %vm858, 0, %v944
    %v947 = vcosq.f32.pop %v945
    %v948 = vsinq.f32.pop %v945
    %vm949 = vweird.f32 %v855
    %v950 = vadd.s32 %v946, 3
    %v951 = vand.u32 %v950, 3
    %vm952 = vcmp.lt.s32.totalorder %v951, 2
    %vm953 = vcmp.eq.s32.totalorder %v951, 0
    %v954 = vxor.u32 %v948, 2147483648
    %v955 = vsel %vm953, %v947, %v954
    %vm956 = vcmp.eq.s32.totalorder %v951, 2
    %v957 = vxor.u32 %v947, 2147483648
    %v958 = vsel %vm956, %v957, %v948
    %v959 = vsel %vm952, %v955, %v958
    %v960 = vsel %vm949, nan, %v959
    %v961 = vand.u32 2147483647, %v856
    %vm962 = vcmp.le.f32.partialorder %v961, 0.7853982
    %vm963 = vcmp.lt.s32.totalorder %v856, 0
    %v964 = vand.u32 %v856, 2139095040
    %v965 = vshrl.u32 %v964, 23
    %v966 = vsub.s32 %v965, 127
    %v967 = vand.u32 2147483647, %v856
    %v968 = vand.u32 %v967, 8388607
    %v969 = vor.u32 %v968, 8388608
    %v970 = vsub.s32 0, %v969
    %v971 = vadd.s32 %v966, 1
    %vm972 = vcmp.gt.s32.totalorder %v971, 0
    %v973 = vsel %vm972, %v971, 0
    %v974 = vshrl.u32 %v973, 5
    %v975 = vand.u32 %v973, 31
    %v976 = vsub.s32 32, %v975
    %v977 = vshrl.u32 683565275, %v976
    %v978 = vshll.u32 683565275, %v975
    %v979 = vshrl.u32 2475754826, %v976
    %v980 = vor.u32 %v978, %v979
    %v981 = vshll.u32 2475754826, %v975
    %v982 = vshrl.u32 2131351028, %v976
    %v983 = vor.u32 %v981, %v982
    %v984 = vshll.u32 2131351028, %v975
    %v985 = vshrl.u32 2102212464, %v976
    %v986 = vor.u32 %v984, %v985
    %v987 = vshll.u32 2102212464, %v975
    %v988 = vshrl.u32 920167782, %v976
    %v989 = vor.u32 %v987, %v988
    %v990 = vshll.u32 920167782, %v975
    %v991 = vshrl.u32 1326507024, %v976
    %v992 = vor.u32 %v990, %v991
    %vm993 = vcmp.lt.s32.totalorder %v974, 1
    %vm994 = vcmp.lt.s32.totalorder %v974, 2
    %vm995 = vcmp.lt.s32.totalorder %v974, 3
    %vm996 = vcmp.lt.s32.totalorder %v974, 4
    %v997 = vsel %vm993, %v977, %v980
    %v998 = vsel %vm996, %v986, 2102212464
    %v999 = vsel %vm995, %v983, %v998
    %v1000 = vsel %vm994, %v997, %v999
    %v1001 = vsel %vm993, %v980, %v983
    %v1002 = vsel %vm996, %v989, 920167782
    %v1003 = vsel %vm995, %v986, %v1002
    %v1004 = vsel %vm994, %v1001, %v1003
    %v1005 = vsel %vm993, %v983, %v986
    %v1006 = vsel %vm996, %v992, 1326507024
    %v1007 = vsel %vm995, %v989, %v1006
    %v1008 = vsel %vm994, %v1005, %v1007
    %v1009 = vshll.u32 %v969, 8
    %v1010 = vmul.u32.u64.compose %v1009, %v1008
    %v1011 = vextract.low.u32 %v1010
    %v1012 = vextract.high.u32 %v1010
    %v1013 = vmul.u32.u64.compose %v1009, %v1004
    %v1014 = vextract.low.u32 %v1013
    %v1015 = vextract.high.u32 %v1013
    %v1016 = vmul.u32 %v1009, %v1000
    %v1017 = vadd.s32 %v1012, %v1014
    %vm1018 = vc.u32 %v1012, %v1014
    %v1019 = vadd.s32 %v1015, 1
    %v1020 = vsel %vm1018, %v1019, %v1015
    %v1021 = vadd.s32 %v1016, %v1020
    %v1022 = vadd.s32 %v1021, 536870912
    %v1023 = vshrl.u32 %v1022, 30
    %v1024 = vshll.u32 %v1023, 30
    %v1025 = vsub.s32 %v1021, %v1024
    %vm1026 = vcmp.lt.s32.totalorder %v1025, 0
    %v1027 = vsub.s32 0, %v1025
    %v1028 = vsel %vm1026, %v1027, %v1025
    %v1029 = vclz %v1028
    %v1030 = vsub.s32 %v1029, 2
    %vm1031 = vcmp.gt.s32.totalorder 0, %v1030
    %v1032 = vsel %vm1031, 0, %v1030
    %v1033 = vsub.s32 32, %v1032
    %v1034 = vshll.u32 %v1025, %v1032
    %v1035 = vshrl.u32 %v1017, %v1033
    %v1036 = vor.u32 %v1034, %v1035
    %v1037 = vsub.s32 4294967266, %v1032
    %v1038 = vadd.s32 %v1037, 127
    %v1039 = vshll.u32 %v1038, 23
    %v1040 = vor.u32 4788187, %v1039
    %v1041 = vand.u32 2147483647, %v1040
    %v1043 = vcvt.s32.f32 %v1036
    %v1044 = vmul.f32 %v1043, %v1041
    %v1045 = vxor.u32 %v1044, 2147483648
    %v1046 = vsel %vm963, %v1045, %v1044
    %v1047 = vsub.s32 4, %v1023
    %v1048 = vsel %vm963, %v1047, %v1023
    %v1049 = vsel %vm962, %v856, %v1046
    %v1050 = vsel %vm962, 0, %v1048
    %v1051 = vcosq.f32.pop %v1049
    %v1052 = vsinq.f32.pop %v1049
    %vm1053 = vweird.f32 %v856
    %v1054 = vadd.s32 %v1050, 3
    %v1055 = vand.u32 %v1054, 3
    %vm1056 = vcmp.lt.s32.totalorder %v1055, 2
    %vm1057 = vcmp.eq.s32.totalorder %v1055, 0
    %v1058 = vxor.u32 %v1052, 2147483648
    %v1059 = vsel %vm1057, %v1051, %v1058
    %vm1060 = vcmp.eq.s32.totalorder %v1055, 2
    %v1061 = vxor.u32 %v1051, 2147483648
    %v1062 = vsel %vm1060, %v1061, %v1052
    %v1063 = vsel %vm1056, %v1059, %v1062
    %v1064 = vsel %vm1053, nan, %v1063
    %v1065 = vand.u32 2147483647, %v855
    %vm1066 = vcmp.le.f32.partialorder %v1065, 0.7853982
    %vm1067 = vcmp.lt.s32.totalorder %v855, 0
    %v1068 = vand.u32 %v855, 2139095040
    %v1069 = vshrl.u32 %v1068, 23
    %v1070 = vsub.s32 %v1069, 127
    %v1071 = vand.u32 2147483647, %v855
    %v1072 = vand.u32 %v1071, 8388607
    %v1073 = vor.u32 %v1072, 8388608
    %v1074 = vsub.s32 0, %v1073
    %v1075 = vadd.s32 %v1070, 1
    %vm1076 = vcmp.gt.s32.totalorder %v1075, 0
    %v1077 = vsel %vm1076, %v1075, 0
    %v1078 = vshrl.u32 %v1077, 5
    %v1079 = vand.u32 %v1077, 31
    %v1080 = vsub.s32 32, %v1079
    %v1081 = vshrl.u32 683565275, %v1080
    %v1082 = vshll.u32 683565275, %v1079
    %v1083 = vshrl.u32 2475754826, %v1080
    %v1084 = vor.u32 %v1082, %v1083
    %v1085 = vshll.u32 2475754826, %v1079
    %v1086 = vshrl.u32 2131351028, %v1080
    %v1087 = vor.u32 %v1085, %v1086
    %v1088 = vshll.u32 2131351028, %v1079
    %v1089 = vshrl.u32 2102212464, %v1080
    %v1090 = vor.u32 %v1088, %v1089
    %v1091 = vshll.u32 2102212464, %v1079
    %v1092 = vshrl.u32 920167782, %v1080
    %v1093 = vor.u32 %v1091, %v1092
    %v1094 = vshll.u32 920167782, %v1079
    %v1095 = vshrl.u32 1326507024, %v1080
    %v1096 = vor.u32 %v1094, %v1095
    %vm1097 = vcmp.lt.s32.totalorder %v1078, 1
    %vm1098 = vcmp.lt.s32.totalorder %v1078, 2
    %vm1099 = vcmp.lt.s32.totalorder %v1078, 3
    %vm1100 = vcmp.lt.s32.totalorder %v1078, 4
    %v1101 = vsel %vm1097, %v1081, %v1084
    %v1102 = vsel %vm1100, %v1090, 2102212464
    %v1103 = vsel %vm1099, %v1087, %v1102
    %v1104 = vsel %vm1098, %v1101, %v1103
    %v1105 = vsel %vm1097, %v1084, %v1087
    %v1106 = vsel %vm1100, %v1093, 920167782
    %v1107 = vsel %vm1099, %v1090, %v1106
    %v1108 = vsel %vm1098, %v1105, %v1107
    %v1109 = vsel %vm1097, %v1087, %v1090
    %v1110 = vsel %vm1100, %v1096, 1326507024
    %v1111 = vsel %vm1099, %v1093, %v1110
    %v1112 = vsel %vm1098, %v1109, %v1111
    %v1113 = vshll.u32 %v1073, 8
    %v1114 = vmul.u32.u64.compose %v1113, %v1112
    %v1115 = vextract.low.u32 %v1114
    %v1116 = vextract.high.u32 %v1114
    %v1117 = vmul.u32.u64.compose %v1113, %v1108
    %v1118 = vextract.low.u32 %v1117
    %v1119 = vextract.high.u32 %v1117
    %v1120 = vmul.u32 %v1113, %v1104
    %v1121 = vadd.s32 %v1116, %v1118
    %vm1122 = vc.u32 %v1116, %v1118
    %v1123 = vadd.s32 %v1119, 1
    %v1124 = vsel %vm1122, %v1123, %v1119
    %v1125 = vadd.s32 %v1120, %v1124
    %v1126 = vadd.s32 %v1125, 536870912
    %v1127 = vshrl.u32 %v1126, 30
    %v1128 = vshll.u32 %v1127, 30
    %v1129 = vsub.s32 %v1125, %v1128
    %vm1130 = vcmp.lt.s32.totalorder %v1129, 0
    %v1131 = vsub.s32 0, %v1129
    %v1132 = vsel %vm1130, %v1131, %v1129
    %v1133 = vclz %v1132
    %v1134 = vsub.s32 %v1133, 2
    %vm1135 = vcmp.gt.s32.totalorder 0, %v1134
    %v1136 = vsel %vm1135, 0, %v1134
    %v1137 = vsub.s32 32, %v1136
    %v1138 = vshll.u32 %v1129, %v1136
    %v1139 = vshrl.u32 %v1121, %v1137
    %v1140 = vor.u32 %v1138, %v1139
    %v1141 = vsub.s32 4294967266, %v1136
    %v1142 = vadd.s32 %v1141, 127
    %v1143 = vshll.u32 %v1142, 23
    %v1144 = vor.u32 4788187, %v1143
    %v1145 = vand.u32 2147483647, %v1144
    %v1147 = vcvt.s32.f32 %v1140
    %v1148 = vmul.f32 %v1147, %v1145
    %v1149 = vxor.u32 %v1148, 2147483648
    %v1150 = vsel %vm1067, %v1149, %v1148
    %v1151 = vsub.s32 4, %v1127
    %v1152 = vsel %vm1067, %v1151, %v1127
    %v1153 = vsel %vm1066, %v855, %v1150
    %v1154 = vsel %vm1066, 0, %v1152
    %v1155 = vcosq.f32.pop %v1153
    %v1156 = vsinq.f32.pop %v1153
    %vm1157 = vweird.f32 %v855
    %v1158 = vand.u32 %v1154, 3
    %vm1159 = vcmp.lt.s32.totalorder %v1158, 2
    %vm1160 = vcmp.eq.s32.totalorder %v1158, 0
    %v1161 = vxor.u32 %v1156, 2147483648
    %v1162 = vsel %vm1160, %v1155, %v1161
    %vm1163 = vcmp.eq.s32.totalorder %v1158, 2
    %v1164 = vxor.u32 %v1155, 2147483648
    %v1165 = vsel %vm1163, %v1164, %v1156
    %v1166 = vsel %vm1159, %v1162, %v1165
    %v1167 = vsel %vm1157, nan, %v1166
    %v1168 = vand.u32 2147483647, %v856
    %vm1169 = vcmp.le.f32.partialorder %v1168, 0.7853982
    %vm1170 = vcmp.lt.s32.totalorder %v856, 0
    %v1171 = vand.u32 %v856, 2139095040
    %v1172 = vshrl.u32 %v1171, 23
    %v1173 = vsub.s32 %v1172, 127
    %v1174 = vand.u32 2147483647, %v856
    %v1175 = vand.u32 %v1174, 8388607
    %v1176 = vor.u32 %v1175, 8388608
    %v1177 = vsub.s32 0, %v1176
    %v1178 = vadd.s32 %v1173, 1
    %vm1179 = vcmp.gt.s32.totalorder %v1178, 0
    %v1180 = vsel %vm1179, %v1178, 0
    %v1181 = vshrl.u32 %v1180, 5
    %v1182 = vand.u32 %v1180, 31
    %v1183 = vsub.s32 32, %v1182
    %v1184 = vshrl.u32 683565275, %v1183
    %v1185 = vshll.u32 683565275, %v1182
    %v1186 = vshrl.u32 2475754826, %v1183
    %v1187 = vor.u32 %v1185, %v1186
    %v1188 = vshll.u32 2475754826, %v1182
    %v1189 = vshrl.u32 2131351028, %v1183
    %v1190 = vor.u32 %v1188, %v1189
    %v1191 = vshll.u32 2131351028, %v1182
    %v1192 = vshrl.u32 2102212464, %v1183
    %v1193 = vor.u32 %v1191, %v1192
    %v1194 = vshll.u32 2102212464, %v1182
    %v1195 = vshrl.u32 920167782, %v1183
    %v1196 = vor.u32 %v1194, %v1195
    %v1197 = vshll.u32 920167782, %v1182
    %v1198 = vshrl.u32 1326507024, %v1183
    %v1199 = vor.u32 %v1197, %v1198
    %vm1200 = vcmp.lt.s32.totalorder %v1181, 1
    %vm1201 = vcmp.lt.s32.totalorder %v1181, 2
    %vm1202 = vcmp.lt.s32.totalorder %v1181, 3
    %vm1203 = vcmp.lt.s32.totalorder %v1181, 4
    %v1204 = vsel %vm1200, %v1184, %v1187
    %v1205 = vsel %vm1203, %v1193, 2102212464
    %v1206 = vsel %vm1202, %v1190, %v1205
    %v1207 = vsel %vm1201, %v1204, %v1206
    %v1208 = vsel %vm1200, %v1187, %v1190
    %v1209 = vsel %vm1203, %v1196, 920167782
    %v1210 = vsel %vm1202, %v1193, %v1209
    %v1211 = vsel %vm1201, %v1208, %v1210
    %v1212 = vsel %vm1200, %v1190, %v1193
    %v1213 = vsel %vm1203, %v1199, 1326507024
    %v1214 = vsel %vm1202, %v1196, %v1213
    %v1215 = vsel %vm1201, %v1212, %v1214
    %v1216 = vshll.u32 %v1176, 8
    %v1217 = vmul.u32.u64.compose %v1216, %v1215
    %v1218 = vextract.low.u32 %v1217
    %v1219 = vextract.high.u32 %v1217
    %v1220 = vmul.u32.u64.compose %v1216, %v1211
    %v1221 = vextract.low.u32 %v1220
    %v1222 = vextract.high.u32 %v1220
    %v1223 = vmul.u32 %v1216, %v1207
    %v1224 = vadd.s32 %v1219, %v1221
    %vm1225 = vc.u32 %v1219, %v1221
    %v1226 = vadd.s32 %v1222, 1
    %v1227 = vsel %vm1225, %v1226, %v1222
    %v1228 = vadd.s32 %v1223, %v1227
    %v1229 = vadd.s32 %v1228, 536870912
    %v1230 = vshrl.u32 %v1229, 30
    %v1231 = vshll.u32 %v1230, 30
    %v1232 = vsub.s32 %v1228, %v1231
    %vm1233 = vcmp.lt.s32.totalorder %v1232, 0
    %v1234 = vsub.s32 0, %v1232
    %v1235 = vsel %vm1233, %v1234, %v1232
    %v1236 = vclz %v1235
    %v1237 = vsub.s32 %v1236, 2
    %vm1238 = vcmp.gt.s32.totalorder 0, %v1237
    %v1239 = vsel %vm1238, 0, %v1237
    %v1240 = vsub.s32 32, %v1239
    %v1241 = vshll.u32 %v1232, %v1239
    %v1242 = vshrl.u32 %v1224, %v1240
    %v1243 = vor.u32 %v1241, %v1242
    %v1244 = vsub.s32 4294967266, %v1239
    %v1245 = vadd.s32 %v1244, 127
    %v1246 = vshll.u32 %v1245, 23
    %v1247 = vor.u32 4788187, %v1246
    %v1248 = vand.u32 2147483647, %v1247
    %v1250 = vcvt.s32.f32 %v1243
    %v1251 = vmul.f32 %v1250, %v1248
    %v1252 = vxor.u32 %v1251, 2147483648
    %v1253 = vsel %vm1170, %v1252, %v1251
    %v1254 = vsub.s32 4, %v1230
    %v1255 = vsel %vm1170, %v1254, %v1230
    %v1256 = vsel %vm1169, %v856, %v1253
    %v1257 = vsel %vm1169, 0, %v1255
    %v1258 = vcosq.f32.pop %v1256
    %v1259 = vsinq.f32.pop %v1256
    %vm1260 = vweird.f32 %v856
    %v1261 = vand.u32 %v1257, 3
    %vm1262 = vcmp.lt.s32.totalorder %v1261, 2
    %vm1263 = vcmp.eq.s32.totalorder %v1261, 0
    %v1264 = vxor.u32 %v1259, 2147483648
    %v1265 = vsel %vm1263, %v1258, %v1264
    %vm1266 = vcmp.eq.s32.totalorder %v1261, 2
    %v1267 = vxor.u32 %v1258, 2147483648
    %v1268 = vsel %vm1266, %v1267, %v1259
    %v1269 = vsel %vm1262, %v1265, %v1268
    %v1270 = vsel %vm1260, nan, %v1269
    %v1271 = vmul.f32 %v23, 8.0
    %v1272 = vmul.f32 %v24, 8.0
    %v1273 = vand.u32 2147483647, %v1271
    %vm1274 = vcmp.le.f32.partialorder %v1273, 0.7853982
    %vm1275 = vcmp.lt.s32.totalorder %v1271, 0
    %v1276 = vand.u32 %v1271, 2139095040
    %v1277 = vshrl.u32 %v1276, 23
    %v1278 = vsub.s32 %v1277, 127
    %v1279 = vand.u32 2147483647, %v1271
    %v1280 = vand.u32 %v1279, 8388607
    %v1281 = vor.u32 %v1280, 8388608
    %v1282 = vsub.s32 0, %v1281
    %v1283 = vadd.s32 %v1278, 1
    %vm1284 = vcmp.gt.s32.totalorder %v1283, 0
    %v1285 = vsel %vm1284, %v1283, 0
    %v1286 = vshrl.u32 %v1285, 5
    %v1287 = vand.u32 %v1285, 31
    %v1288 = vsub.s32 32, %v1287
    %v1289 = vshrl.u32 683565275, %v1288
    %v1290 = vshll.u32 683565275, %v1287
    %v1291 = vshrl.u32 2475754826, %v1288
    %v1292 = vor.u32 %v1290, %v1291
    %v1293 = vshll.u32 2475754826, %v1287
    %v1294 = vshrl.u32 2131351028, %v1288
    %v1295 = vor.u32 %v1293, %v1294
    %v1296 = vshll.u32 2131351028, %v1287
    %v1297 = vshrl.u32 2102212464, %v1288
    %v1298 = vor.u32 %v1296, %v1297
    %v1299 = vshll.u32 2102212464, %v1287
    %v1300 = vshrl.u32 920167782, %v1288
    %v1301 = vor.u32 %v1299, %v1300
    %v1302 = vshll.u32 920167782, %v1287
    %v1303 = vshrl.u32 1326507024, %v1288
    %v1304 = vor.u32 %v1302, %v1303
    %vm1305 = vcmp.lt.s32.totalorder %v1286, 1
    %vm1306 = vcmp.lt.s32.totalorder %v1286, 2
    %vm1307 = vcmp.lt.s32.totalorder %v1286, 3
    %vm1308 = vcmp.lt.s32.totalorder %v1286, 4
    %v1309 = vsel %vm1305, %v1289, %v1292
    %v1310 = vsel %vm1308, %v1298, 2102212464
    %v1311 = vsel %vm1307, %v1295, %v1310
    %v1312 = vsel %vm1306, %v1309, %v1311
    %v1313 = vsel %vm1305, %v1292, %v1295
    %v1314 = vsel %vm1308, %v1301, 920167782
    %v1315 = vsel %vm1307, %v1298, %v1314
    %v1316 = vsel %vm1306, %v1313, %v1315
    %v1317 = vsel %vm1305, %v1295, %v1298
    %v1318 = vsel %vm1308, %v1304, 1326507024
    %v1319 = vsel %vm1307, %v1301, %v1318
    %v1320 = vsel %vm1306, %v1317, %v1319
    %v1321 = vshll.u32 %v1281, 8
    %v1322 = vmul.u32.u64.compose %v1321, %v1320
    %v1323 = vextract.low.u32 %v1322
    %v1324 = vextract.high.u32 %v1322
    %v1325 = vmul.u32.u64.compose %v1321, %v1316
    %v1326 = vextract.low.u32 %v1325
    %v1327 = vextract.high.u32 %v1325
    %v1328 = vmul.u32 %v1321, %v1312
    %v1329 = vadd.s32 %v1324, %v1326
    %vm1330 = vc.u32 %v1324, %v1326
    %v1331 = vadd.s32 %v1327, 1
    %v1332 = vsel %vm1330, %v1331, %v1327
    %v1333 = vadd.s32 %v1328, %v1332
    %v1334 = vadd.s32 %v1333, 536870912
    %v1335 = vshrl.u32 %v1334, 30
    %v1336 = vshll.u32 %v1335, 30
    %v1337 = vsub.s32 %v1333, %v1336
    %vm1338 = vcmp.lt.s32.totalorder %v1337, 0
    %v1339 = vsub.s32 0, %v1337
    %v1340 = vsel %vm1338, %v1339, %v1337
    %v1341 = vclz %v1340
    %v1342 = vsub.s32 %v1341, 2
    %vm1343 = vcmp.gt.s32.totalorder 0, %v1342
    %v1344 = vsel %vm1343, 0, %v1342
    %v1345 = vsub.s32 32, %v1344
    %v1346 = vshll.u32 %v1337, %v1344
    %v1347 = vshrl.u32 %v1329, %v1345
    %v1348 = vor.u32 %v1346, %v1347
    %v1349 = vsub.s32 4294967266, %v1344
    %v1350 = vadd.s32 %v1349, 127
    %v1351 = vshll.u32 %v1350, 23
    %v1352 = vor.u32 4788187, %v1351
    %v1353 = vand.u32 2147483647, %v1352
    %v1355 = vcvt.s32.f32 %v1348
    %v1356 = vmul.f32 %v1355, %v1353
    %v1357 = vxor.u32 %v1356, 2147483648
    %v1358 = vsel %vm1275, %v1357, %v1356
    %v1359 = vsub.s32 4, %v1335
    %v1360 = vsel %vm1275, %v1359, %v1335
    %v1361 = vsel %vm1274, %v1271, %v1358
    %v1362 = vsel %vm1274, 0, %v1360
    %v1363 = vcosq.f32.pop %v1361
    %v1364 = vsinq.f32.pop %v1361
    %vm1365 = vweird.f32 %v1271
    %v1366 = vadd.s32 %v1362, 3
    %v1367 = vand.u32 %v1366, 3
    %vm1368 = vcmp.lt.s32.totalorder %v1367, 2
    %vm1369 = vcmp.eq.s32.totalorder %v1367, 0
    %v1370 = vxor.u32 %v1364, 2147483648
    %v1371 = vsel %vm1369, %v1363, %v1370
    %vm1372 = vcmp.eq.s32.totalorder %v1367, 2
    %v1373 = vxor.u32 %v1363, 2147483648
    %v1374 = vsel %vm1372, %v1373, %v1364
    %v1375 = vsel %vm1368, %v1371, %v1374
    %v1376 = vsel %vm1365, nan, %v1375
    %v1377 = vand.u32 2147483647, %v1272
    %vm1378 = vcmp.le.f32.partialorder %v1377, 0.7853982
    %vm1379 = vcmp.lt.s32.totalorder %v1272, 0
    %v1380 = vand.u32 %v1272, 2139095040
    %v1381 = vshrl.u32 %v1380, 23
    %v1382 = vsub.s32 %v1381, 127
    %v1383 = vand.u32 2147483647, %v1272
    %v1384 = vand.u32 %v1383, 8388607
    %v1385 = vor.u32 %v1384, 8388608
    %v1386 = vsub.s32 0, %v1385
    %v1387 = vadd.s32 %v1382, 1
    %vm1388 = vcmp.gt.s32.totalorder %v1387, 0
    %v1389 = vsel %vm1388, %v1387, 0
    %v1390 = vshrl.u32 %v1389, 5
    %v1391 = vand.u32 %v1389, 31
    %v1392 = vsub.s32 32, %v1391
    %v1393 = vshrl.u32 683565275, %v1392
    %v1394 = vshll.u32 683565275, %v1391
    %v1395 = vshrl.u32 2475754826, %v1392
    %v1396 = vor.u32 %v1394, %v1395
    %v1397 = vshll.u32 2475754826, %v1391
    %v1398 = vshrl.u32 2131351028, %v1392
    %v1399 = vor.u32 %v1397, %v1398
    %v1400 = vshll.u32 2131351028, %v1391
    %v1401 = vshrl.u32 2102212464, %v1392
    %v1402 = vor.u32 %v1400, %v1401
    %v1403 = vshll.u32 2102212464, %v1391
    %v1404 = vshrl.u32 920167782, %v1392
    %v1405 = vor.u32 %v1403, %v1404
    %v1406 = vshll.u32 920167782, %v1391
    %v1407 = vshrl.u32 1326507024, %v1392
    %v1408 = vor.u32 %v1406, %v1407
    %vm1409 = vcmp.lt.s32.totalorder %v1390, 1
    %vm1410 = vcmp.lt.s32.totalorder %v1390, 2
    %vm1411 = vcmp.lt.s32.totalorder %v1390, 3
    %vm1412 = vcmp.lt.s32.totalorder %v1390, 4
    %v1413 = vsel %vm1409, %v1393, %v1396
    %v1414 = vsel %vm1412, %v1402, 2102212464
    %v1415 = vsel %vm1411, %v1399, %v1414
    %v1416 = vsel %vm1410, %v1413, %v1415
    %v1417 = vsel %vm1409, %v1396, %v1399
    %v1418 = vsel %vm1412, %v1405, 920167782
    %v1419 = vsel %vm1411, %v1402, %v1418
    %v1420 = vsel %vm1410, %v1417, %v1419
    %v1421 = vsel %vm1409, %v1399, %v1402
    %v1422 = vsel %vm1412, %v1408, 1326507024
    %v1423 = vsel %vm1411, %v1405, %v1422
    %v1424 = vsel %vm1410, %v1421, %v1423
    %v1425 = vshll.u32 %v1385, 8
    %v1426 = vmul.u32.u64.compose %v1425, %v1424
    %v1427 = vextract.low.u32 %v1426
    %v1428 = vextract.high.u32 %v1426
    %v1429 = vmul.u32.u64.compose %v1425, %v1420
    %v1430 = vextract.low.u32 %v1429
    %v1431 = vextract.high.u32 %v1429
    %v1432 = vmul.u32 %v1425, %v1416
    %v1433 = vadd.s32 %v1428, %v1430
    %vm1434 = vc.u32 %v1428, %v1430
    %v1435 = vadd.s32 %v1431, 1
    %v1436 = vsel %vm1434, %v1435, %v1431
    %v1437 = vadd.s32 %v1432, %v1436
    %v1438 = vadd.s32 %v1437, 536870912
    %v1439 = vshrl.u32 %v1438, 30
    %v1440 = vshll.u32 %v1439, 30
    %v1441 = vsub.s32 %v1437, %v1440
    %vm1442 = vcmp.lt.s32.totalorder %v1441, 0
    %v1443 = vsub.s32 0, %v1441
    %v1444 = vsel %vm1442, %v1443, %v1441
    %v1445 = vclz %v1444
    %v1446 = vsub.s32 %v1445, 2
    %vm1447 = vcmp.gt.s32.totalorder 0, %v1446
    %v1448 = vsel %vm1447, 0, %v1446
    %v1449 = vsub.s32 32, %v1448
    %v1450 = vshll.u32 %v1441, %v1448
    %v1451 = vshrl.u32 %v1433, %v1449
    %v1452 = vor.u32 %v1450, %v1451
    %v1453 = vsub.s32 4294967266, %v1448
    %v1454 = vadd.s32 %v1453, 127
    %v1455 = vshll.u32 %v1454, 23
    %v1456 = vor.u32 4788187, %v1455
    %v1457 = vand.u32 2147483647, %v1456
    %v1459 = vcvt.s32.f32 %v1452
    %v1460 = vmul.f32 %v1459, %v1457
    %v1461 = vxor.u32 %v1460, 2147483648
    %v1462 = vsel %vm1379, %v1461, %v1460
    %v1463 = vsub.s32 4, %v1439
    %v1464 = vsel %vm1379, %v1463, %v1439
    %v1465 = vsel %vm1378, %v1272, %v1462
    %v1466 = vsel %vm1378, 0, %v1464
    %v1467 = vcosq.f32.pop %v1465
    %v1468 = vsinq.f32.pop %v1465
    %vm1469 = vweird.f32 %v1272
    %v1470 = vadd.s32 %v1466, 3
    %v1471 = vand.u32 %v1470, 3
    %vm1472 = vcmp.lt.s32.totalorder %v1471, 2
    %vm1473 = vcmp.eq.s32.totalorder %v1471, 0
    %v1474 = vxor.u32 %v1468, 2147483648
    %v1475 = vsel %vm1473, %v1467, %v1474
    %vm1476 = vcmp.eq.s32.totalorder %v1471, 2
    %v1477 = vxor.u32 %v1467, 2147483648
    %v1478 = vsel %vm1476, %v1477, %v1468
    %v1479 = vsel %vm1472, %v1475, %v1478
    %v1480 = vsel %vm1469, nan, %v1479
    %v1481 = vand.u32 2147483647, %v1271
    %vm1482 = vcmp.le.f32.partialorder %v1481, 0.7853982
    %vm1483 = vcmp.lt.s32.totalorder %v1271, 0
    %v1484 = vand.u32 %v1271, 2139095040
    %v1485 = vshrl.u32 %v1484, 23
    %v1486 = vsub.s32 %v1485, 127
    %v1487 = vand.u32 2147483647, %v1271
    %v1488 = vand.u32 %v1487, 8388607
    %v1489 = vor.u32 %v1488, 8388608
    %v1490 = vsub.s32 0, %v1489
    %v1491 = vadd.s32 %v1486, 1
    %vm1492 = vcmp.gt.s32.totalorder %v1491, 0
    %v1493 = vsel %vm1492, %v1491, 0
    %v1494 = vshrl.u32 %v1493, 5
    %v1495 = vand.u32 %v1493, 31
    %v1496 = vsub.s32 32, %v1495
    %v1497 = vshrl.u32 683565275, %v1496
    %v1498 = vshll.u32 683565275, %v1495
    %v1499 = vshrl.u32 2475754826, %v1496
    %v1500 = vor.u32 %v1498, %v1499
    %v1501 = vshll.u32 2475754826, %v1495
    %v1502 = vshrl.u32 2131351028, %v1496
    %v1503 = vor.u32 %v1501, %v1502
    %v1504 = vshll.u32 2131351028, %v1495
    %v1505 = vshrl.u32 2102212464, %v1496
    %v1506 = vor.u32 %v1504, %v1505
    %v1507 = vshll.u32 2102212464, %v1495
    %v1508 = vshrl.u32 920167782, %v1496
    %v1509 = vor.u32 %v1507, %v1508
    %v1510 = vshll.u32 920167782, %v1495
    %v1511 = vshrl.u32 1326507024, %v1496
    %v1512 = vor.u32 %v1510, %v1511
    %vm1513 = vcmp.lt.s32.totalorder %v1494, 1
    %vm1514 = vcmp.lt.s32.totalorder %v1494, 2
    %vm1515 = vcmp.lt.s32.totalorder %v1494, 3
    %vm1516 = vcmp.lt.s32.totalorder %v1494, 4
    %v1517 = vsel %vm1513, %v1497, %v1500
    %v1518 = vsel %vm1516, %v1506, 2102212464
    %v1519 = vsel %vm1515, %v1503, %v1518
    %v1520 = vsel %vm1514, %v1517, %v1519
    %v1521 = vsel %vm1513, %v1500, %v1503
    %v1522 = vsel %vm1516, %v1509, 920167782
    %v1523 = vsel %vm1515, %v1506, %v1522
    %v1524 = vsel %vm1514, %v1521, %v1523
    %v1525 = vsel %vm1513, %v1503, %v1506
    %v1526 = vsel %vm1516, %v1512, 1326507024
    %v1527 = vsel %vm1515, %v1509, %v1526
    %v1528 = vsel %vm1514, %v1525, %v1527
    %v1529 = vshll.u32 %v1489, 8
    %v1530 = vmul.u32.u64.compose %v1529, %v1528
    %v1531 = vextract.low.u32 %v1530
    %v1532 = vextract.high.u32 %v1530
    %v1533 = vmul.u32.u64.compose %v1529, %v1524
    %v1534 = vextract.low.u32 %v1533
    %v1535 = vextract.high.u32 %v1533
    %v1536 = vmul.u32 %v1529, %v1520
    %v1537 = vadd.s32 %v1532, %v1534
    %vm1538 = vc.u32 %v1532, %v1534
    %v1539 = vadd.s32 %v1535, 1
    %v1540 = vsel %vm1538, %v1539, %v1535
    %v1541 = vadd.s32 %v1536, %v1540
    %v1542 = vadd.s32 %v1541, 536870912
    %v1543 = vshrl.u32 %v1542, 30
    %v1544 = vshll.u32 %v1543, 30
    %v1545 = vsub.s32 %v1541, %v1544
    %vm1546 = vcmp.lt.s32.totalorder %v1545, 0
    %v1547 = vsub.s32 0, %v1545
    %v1548 = vsel %vm1546, %v1547, %v1545
    %v1549 = vclz %v1548
    %v1550 = vsub.s32 %v1549, 2
    %vm1551 = vcmp.gt.s32.totalorder 0, %v1550
    %v1552 = vsel %vm1551, 0, %v1550
    %v1553 = vsub.s32 32, %v1552
    %v1554 = vshll.u32 %v1545, %v1552
    %v1555 = vshrl.u32 %v1537, %v1553
    %v1556 = vor.u32 %v1554, %v1555
    %v1557 = vsub.s32 4294967266, %v1552
    %v1558 = vadd.s32 %v1557, 127
    %v1559 = vshll.u32 %v1558, 23
    %v1560 = vor.u32 4788187, %v1559
    %v1561 = vand.u32 2147483647, %v1560
    %v1563 = vcvt.s32.f32 %v1556
    %v1564 = vmul.f32 %v1563, %v1561
    %v1565 = vxor.u32 %v1564, 2147483648
    %v1566 = vsel %vm1483, %v1565, %v1564
    %v1567 = vsub.s32 4, %v1543
    %v1568 = vsel %vm1483, %v1567, %v1543
    %v1569 = vsel %vm1482, %v1271, %v1566
    %v1570 = vsel %vm1482, 0, %v1568
    %v1571 = vcosq.f32.pop %v1569
    %v1572 = vsinq.f32.pop %v1569
    %vm1573 = vweird.f32 %v1271
    %v1574 = vand.u32 %v1570, 3
    %vm1575 = vcmp.lt.s32.totalorder %v1574, 2
    %vm1576 = vcmp.eq.s32.totalorder %v1574, 0
    %v1577 = vxor.u32 %v1572, 2147483648
    %v1578 = vsel %vm1576, %v1571, %v1577
    %vm1579 = vcmp.eq.s32.totalorder %v1574, 2
    %v1580 = vxor.u32 %v1571, 2147483648
    %v1581 = vsel %vm1579, %v1580, %v1572
    %v1582 = vsel %vm1575, %v1578, %v1581
    %v1583 = vsel %vm1573, nan, %v1582
    %v1584 = vand.u32 2147483647, %v1272
    %vm1585 = vcmp.le.f32.partialorder %v1584, 0.7853982
    %vm1586 = vcmp.lt.s32.totalorder %v1272, 0
    %v1587 = vand.u32 %v1272, 2139095040
    %v1588 = vshrl.u32 %v1587, 23
    %v1589 = vsub.s32 %v1588, 127
    %v1590 = vand.u32 2147483647, %v1272
    %v1591 = vand.u32 %v1590, 8388607
    %v1592 = vor.u32 %v1591, 8388608
    %v1593 = vsub.s32 0, %v1592
    %v1594 = vadd.s32 %v1589, 1
    %vm1595 = vcmp.gt.s32.totalorder %v1594, 0
    %v1596 = vsel %vm1595, %v1594, 0
    %v1597 = vshrl.u32 %v1596, 5
    %v1598 = vand.u32 %v1596, 31
    %v1599 = vsub.s32 32, %v1598
    %v1600 = vshrl.u32 683565275, %v1599
    %v1601 = vshll.u32 683565275, %v1598
    %v1602 = vshrl.u32 2475754826, %v1599
    %v1603 = vor.u32 %v1601, %v1602
    %v1604 = vshll.u32 2475754826, %v1598
    %v1605 = vshrl.u32 2131351028, %v1599
    %v1606 = vor.u32 %v1604, %v1605
    %v1607 = vshll.u32 2131351028, %v1598
    %v1608 = vshrl.u32 2102212464, %v1599
    %v1609 = vor.u32 %v1607, %v1608
    %v1610 = vshll.u32 2102212464, %v1598
    %v1611 = vshrl.u32 920167782, %v1599
    %v1612 = vor.u32 %v1610, %v1611
    %v1613 = vshll.u32 920167782, %v1598
    %v1614 = vshrl.u32 1326507024, %v1599
    %v1615 = vor.u32 %v1613, %v1614
    %vm1616 = vcmp.lt.s32.totalorder %v1597, 1
    %vm1617 = vcmp.lt.s32.totalorder %v1597, 2
    %vm1618 = vcmp.lt.s32.totalorder %v1597, 3
    %vm1619 = vcmp.lt.s32.totalorder %v1597, 4
    %v1620 = vsel %vm1616, %v1600, %v1603
    %v1621 = vsel %vm1619, %v1609, 2102212464
    %v1622 = vsel %vm1618, %v1606, %v1621
    %v1623 = vsel %vm1617, %v1620, %v1622
    %v1624 = vsel %vm1616, %v1603, %v1606
    %v1625 = vsel %vm1619, %v1612, 920167782
    %v1626 = vsel %vm1618, %v1609, %v1625
    %v1627 = vsel %vm1617, %v1624, %v1626
    %v1628 = vsel %vm1616, %v1606, %v1609
    %v1629 = vsel %vm1619, %v1615, 1326507024
    %v1630 = vsel %vm1618, %v1612, %v1629
    %v1631 = vsel %vm1617, %v1628, %v1630
    %v1632 = vshll.u32 %v1592, 8
    %v1633 = vmul.u32.u64.compose %v1632, %v1631
    %v1634 = vextract.low.u32 %v1633
    %v1635 = vextract.high.u32 %v1633
    %v1636 = vmul.u32.u64.compose %v1632, %v1627
    %v1637 = vextract.low.u32 %v1636
    %v1638 = vextract.high.u32 %v1636
    %v1639 = vmul.u32 %v1632, %v1623
    %v1640 = vadd.s32 %v1635, %v1637
    %vm1641 = vc.u32 %v1635, %v1637
    %v1642 = vadd.s32 %v1638, 1
    %v1643 = vsel %vm1641, %v1642, %v1638
    %v1644 = vadd.s32 %v1639, %v1643
    %v1645 = vadd.s32 %v1644, 536870912
    %v1646 = vshrl.u32 %v1645, 30
    %v1647 = vshll.u32 %v1646, 30
    %v1648 = vsub.s32 %v1644, %v1647
    %vm1649 = vcmp.lt.s32.totalorder %v1648, 0
    %v1650 = vsub.s32 0, %v1648
    %v1651 = vsel %vm1649, %v1650, %v1648
    %v1652 = vclz %v1651
    %v1653 = vsub.s32 %v1652, 2
    %vm1654 = vcmp.gt.s32.totalorder 0, %v1653
    %v1655 = vsel %vm1654, 0, %v1653
    %v1656 = vsub.s32 32, %v1655
    %v1657 = vshll.u32 %v1648, %v1655
    %v1658 = vshrl.u32 %v1640, %v1656
    %v1659 = vor.u32 %v1657, %v1658
    %v1660 = vsub.s32 4294967266, %v1655
    %v1661 = vadd.s32 %v1660, 127
    %v1662 = vshll.u32 %v1661, 23
    %v1663 = vor.u32 4788187, %v1662
    %v1664 = vand.u32 2147483647, %v1663
    %v1666 = vcvt.s32.f32 %v1659
    %v1667 = vmul.f32 %v1666, %v1664
    %v1668 = vxor.u32 %v1667, 2147483648
    %v1669 = vsel %vm1586, %v1668, %v1667
    %v1670 = vsub.s32 4, %v1646
    %v1671 = vsel %vm1586, %v1670, %v1646
    %v1672 = vsel %vm1585, %v1272, %v1669
    %v1673 = vsel %vm1585, 0, %v1671
    %v1674 = vcosq.f32.pop %v1672
    %v1675 = vsinq.f32.pop %v1672
    %vm1676 = vweird.f32 %v1272
    %v1677 = vand.u32 %v1673, 3
    %vm1678 = vcmp.lt.s32.totalorder %v1677, 2
    %vm1679 = vcmp.eq.s32.totalorder %v1677, 0
    %v1680 = vxor.u32 %v1675, 2147483648
    %v1681 = vsel %vm1679, %v1674, %v1680
    %vm1682 = vcmp.eq.s32.totalorder %v1677, 2
    %v1683 = vxor.u32 %v1674, 2147483648
    %v1684 = vsel %vm1682, %v1683, %v1675
    %v1685 = vsel %vm1678, %v1681, %v1684
    %v1686 = vsel %vm1676, nan, %v1685
    %1689 = vrot.lane.b32.xlu0 %v128, 16
    %v1690 = vpop.permute.xlu0 %1689
    %1691 = vrot.lane.b32.xlu0 %v232, 16
    %v1692 = vpop.permute.xlu0 %1691
    %1697 = vrot.lane.b32.xlu0 %v335, 32
    %v1698 = vpop.permute.xlu0 %1697
    %1699 = vrot.lane.b32.xlu0 %v438, 32
    %v1700 = vpop.permute.xlu0 %1699
    %1705 = vrot.lane.b32.xlu0 %v544, 48
    %v1706 = vpop.permute.xlu0 %1705
    %1707 = vrot.lane.b32.xlu0 %v648, 48
    %v1708 = vpop.permute.xlu0 %1707
    %1713 = vrot.lane.b32.xlu0 %v751, 64
    %v1714 = vpop.permute.xlu0 %1713
    %1715 = vrot.lane.b32.xlu0 %v854, 64
    %v1716 = vpop.permute.xlu0 %1715
    %1721 = vrot.lane.b32.xlu0 %v960, 80
    %v1722 = vpop.permute.xlu0 %1721
    %1723 = vrot.lane.b32.xlu0 %v1064, 80
    %v1724 = vpop.permute.xlu0 %1723
    %1729 = vrot.lane.b32.xlu0 %v1167, 96
    %v1730 = vpop.permute.xlu0 %1729
    %1731 = vrot.lane.b32.xlu0 %v1270, 96
    %v1732 = vpop.permute.xlu0 %1731
    %1737 = vrot.lane.b32.xlu0 %v1376, 112
    %v1738 = vpop.permute.xlu0 %1737
    %1739 = vrot.lane.b32.xlu0 %v1480, 112
    %v1740 = vpop.permute.xlu0 %1739
    %vm1743 = vcmask 130048
    %v1744 = vsel %vm1743, %v23, %v1690
    %v1745 = vsel %vm1743, %v24, %v1692
    %vm1746 = vcmask 261120
    %v1747 = vsel %vm1746, %v1744, %v1698
    %v1748 = vsel %vm1746, %v1745, %v1700
    %vm1749 = vcmask 392192
    %v1750 = vsel %vm1749, %v1747, %v1706
    %v1751 = vsel %vm1749, %v1748, %v1708
    %vm1752 = vcmask 523264
    %v1753 = vsel %vm1752, %v1750, %v1714
    %v1754 = vsel %vm1752, %v1751, %v1716
    %vm1755 = vcmask 654336
    %v1756 = vsel %vm1755, %v1753, %v1722
    %v1757 = vsel %vm1755, %v1754, %v1724
    %vm1758 = vcmask 785408
    %v1759 = vsel %vm1758, %v1756, %v1730
    %v1760 = vsel %vm1758, %v1757, %v1732
    %vm1761 = vcmask 916480
    %v1762 = vsel %vm1761, %v1759, %v1738
    %v1763 = vsel %vm1761, %v1760, %v1740
    %1764 = vst [vmem:[#allocation5] sm:$0xff] %v1762
    %1765 = vst.msk [vmem:[#allocation5 + $0x8] sm:$0xff] %vm1743, %v1583
    %1766 = vst [vmem:[#allocation5 + $0x10] sm:$0xff] %v1763
    %1767 = vst.msk [vmem:[#allocation5 + $0x18] sm:$0xff] %vm1743, %v1686
    // Predicated region
    $region10: #{tpu_custom_call.1} parent=1 // pred_check
      _
    $region11: #{tpu_custom_call.1} parent=1 // pred_check_branch
      %1769 = sbr.rel (0) target = $region13
    $region12: #{tpu_custom_call.1} parent=1 // pred_region
      %s1771 = ssub.s32 512, 512
      %1772 = vsyncadd [#allocation4], %s1771
      %s1773 = sshll.u32 [#allocation5], 4
      %s1774 = int_to_ptr.vmem [resolvable:$true] %s1773
      %1779 = dma.vmem_to_hbm [thread:$0]  %s1774, 512, %s1, [#allocation4], 256, 256, 16
    $region13: #{tpu_custom_call.1} parent=1 // pred_fallthru
      _
    // Predicated region
    $region14: #{tpu_custom_call.1} parent=1 // pred_check
      _
    $region15: #{tpu_custom_call.1} parent=1 // pred_check_branch
      %1781 = sbr.rel (0) target = $region17
    $region16: #{tpu_custom_call.1} parent=1 // pred_region
      %1782 = dma.done [#allocation4], 512
    $region17: #{tpu_custom_call.1} parent=1 // pred_fallthru
      _
    %1783 = vsyncpa [#allocation3], 1
    %1784 = vsyncpa [#allocation4], 1

</llo_original>
